<compile_context>
chip_gen: v7x
topology: tpu7x:2x2x1
jax: 0.10.0
libtpu: 0.0.40
codegen_flags: <defaults>
</compile_context>

<pallas_src>
import functools

import jax
import jax.numpy as jnp
import numpy as np
from jax.experimental import pallas as pl
from jax.experimental.pallas import tpu as pltpu

LANE = 128


def _sig(x):
    return 1.0 / (1.0 + jnp.exp(-x))


def _yolo_loss_kernel(valid_ref, objcnt_ref, segid_ref,     # scalar prefetch (SMEM)
                      anc_ref, pred_ref, tgt_ref,           # inputs
                      out_ref,                               # (6, 8, 128) accumulator
                      *, num_classes, tile_m):
    c = pl.program_id(0)
    i = pl.program_id(1)
    tile_id = c * pl.num_programs(1) + i

    @pl.when(i == 0)
    def _init():
        out_ref[...] = jnp.zeros_like(out_ref)

    def fold(x):
        # (tile_m, 128) -> (8, 128); 8-aligned sublane slices -> pure VPU adds.
        acc = x[0:8, :]
        for r in range(8, tile_m, 8):
            acc = acc + x[r:r + 8, :]
        return acc

    p0 = pred_ref[0]                       # (tile_m, 128)
    t0 = tgt_ref[0]

    # Tail-padding mask rebuilt from iota + per-tile valid count (no HBM row).
    within = (jax.lax.broadcasted_iota(jnp.int32, (tile_m, LANE), 0) * LANE
              + jax.lax.broadcasted_iota(jnp.int32, (tile_m, LANE), 1))
    valid = within < valid_ref[tile_id]

    obj_f = jnp.where((t0 == 1.0) & valid, 1.0, 0.0)
    noobj_f = jnp.where((t0 == 0.0) & valid, 1.0, 0.0)

    # ---- no-object loss: BCEWithLogits(p0, t0) over noobj cells ------------
    bce = jnp.maximum(p0, 0.0) - p0 * t0 + jnp.log(1.0 + jnp.exp(-jnp.abs(p0)))
    out_ref[0] += fold(bce * noobj_f)      # sum of noobj BCE
    out_ref[1] += fold(noobj_f)            # noobj count
    out_ref[3] += fold(obj_f)              # obj count

    # ---- object-dependent math: skipped for (common) object-free tiles -----
    @pl.when(objcnt_ref[tile_id] > 0)
    def _obj_terms():
        a2 = segid_ref[tile_id] * 2
        aw = anc_ref[a2]                   # scalar anchor width for this tile
        ah = anc_ref[a2 + 1]               # scalar anchor height

        px, py, pw, ph = pred_ref[1], pred_ref[2], pred_ref[3], pred_ref[4]
        tx, ty, tw, th = tgt_ref[1], tgt_ref[2], tgt_ref[3], tgt_ref[4]

        sx = _sig(px)
        sy = _sig(py)
        bw = jnp.exp(pw * aw)
        bh = jnp.exp(ph * ah)

        # IoU (midpoint format) against targets[..., 1:5]
        b1x1 = sx - bw * 0.5
        b1x2 = sx + bw * 0.5
        b1y1 = sy - bh * 0.5
        b1y2 = sy + bh * 0.5
        b2x1 = tx - tw * 0.5
        b2x2 = tx + tw * 0.5
        b2y1 = ty - th * 0.5
        b2y2 = ty + th * 0.5
        wi = jnp.maximum(jnp.minimum(b1x2, b2x2) - jnp.maximum(b1x1, b2x1), 0.0)
        hi = jnp.maximum(jnp.minimum(b1y2, b2y2) - jnp.maximum(b1y1, b2y1), 0.0)
        inter = wi * hi
        area1 = jnp.abs((b1x2 - b1x1) * (b1y2 - b1y1))
        area2 = jnp.abs((b2x2 - b2x1) * (b2y2 - b2y1))
        iou = inter / (area1 + area2 - inter + 1e-6)

        # object loss: MSE(sigmoid(p0), iou * t0) over obj cells
        obj_sq = (_sig(p0) - iou * t0) ** 2
        out_ref[2] += fold(obj_sq * obj_f)

        # box loss: MSE([sig(px),sig(py),pw,ph], [tx,ty,log(1e-16+t/a)]) over obj
        tlw = jnp.log(1e-16 + tw / aw)
        tlh = jnp.log(1e-16 + th / ah)
        box_sq = ((sx - tx) ** 2 + (sy - ty) ** 2
                  + (pw - tlw) ** 2 + (ph - tlh) ** 2)
        out_ref[4] += fold(box_sq * obj_f)

        # class loss: CrossEntropy(p[5:], t[5]) over obj cells.
        # Logits live on separate (tile_m,128) tiles -> logsumexp is pure VPU.
        cls_i = tgt_ref[5].astype(jnp.int32)
        m = pred_ref[5]
        for k in range(1, num_classes):
            m = jnp.maximum(m, pred_ref[5 + k])
        se = jnp.zeros_like(m)
        tgt_logit = jnp.zeros_like(m)
        for k in range(num_classes):
            lk = pred_ref[5 + k]
            se = se + jnp.exp(lk - m)
            tgt_logit = tgt_logit + jnp.where(cls_i == k, lk, 0.0)
        ce = m + jnp.log(se) - tgt_logit
        out_ref[5] += fold(ce * obj_f)


@functools.partial(jax.jit, static_argnames=("tile_m", "num_cores"))
def yolo_loss(predictions, targets, anchors, *, tile_m=32, num_cores=2):
    """predictions: (B, 3, S, S, 5+C), targets: (B, 3, S, S, 6), anchors: (3, 2)."""
    B, A, S1, S2, P = predictions.shape
    num_classes = P - 5
    seg = B * S1 * S2                       # cells per anchor/scale segment
    cells_per_tile = tile_m * LANE

    tiles_per_seg = pl.cdiv(seg, cells_per_tile)
    seg_pad = tiles_per_seg * cells_per_tile
    total_tiles = A * tiles_per_seg
    total_tiles += (-total_tiles) % num_cores       # even split across TCs
    tiles_per_core = total_tiles // num_cores
    n_total = total_tiles * cells_per_tile
    extra_cells = n_total - A * seg_pad

    def to_layout(x, nparams):
        # (B, A, S1, S2, nparams) -> params-major (nparams, n_total // 128, 128)
        xa = jnp.moveaxis(x, 1, 0).reshape(A, seg, nparams).astype(jnp.float32)
        xa = jnp.pad(xa, ((0, 0), (0, seg_pad - seg), (0, 0)))
        xf = xa.reshape(A * seg_pad, nparams)
        if extra_cells:
            xf = jnp.pad(xf, ((0, extra_cells), (0, 0)))
        return xf.T.reshape(nparams, n_total // LANE, LANE)

    pred3 = to_layout(predictions, P)
    tgt3 = to_layout(targets, 6)

    # Per-tile scalar metadata (SMEM scalar prefetch).  Tiles never straddle
    # an anchor segment, so each tile has a single anchor and a prefix of
    # valid cells.
    t_ids = np.arange(total_tiles)
    seg_ids = np.minimum(t_ids // tiles_per_seg, A - 1).astype(np.int32)
    in_seg = t_ids % tiles_per_seg
    valid_cnt = jnp.asarray(
        np.where(t_ids < A * tiles_per_seg,
                 np.clip(seg - in_seg * cells_per_tile, 0, cells_per_tile),
                 0).astype(np.int32))
    seg_ids_j = jnp.asarray(seg_ids)
    obj_cnt = jnp.sum((tgt3[0] == 1.0).reshape(total_tiles, cells_per_tile),
                      axis=1).astype(jnp.int32)
    anc_flat = anchors.reshape(-1).astype(jnp.float32)      # (6,) -> SMEM

    kernel = functools.partial(_yolo_loss_kernel,
                               num_classes=num_classes, tile_m=tile_m)

    out = pl.pallas_call(
        kernel,
        out_shape=jax.ShapeDtypeStruct((num_cores, 6, 8, LANE), jnp.float32),
        grid_spec=pltpu.PrefetchScalarGridSpec(
            num_scalar_prefetch=3,
            grid=(num_cores, tiles_per_core),
            in_specs=[
                pl.BlockSpec(memory_space=pltpu.MemorySpace.SMEM),   # anchors
                pl.BlockSpec((P, tile_m, LANE),
                             lambda c, i, vc, oc, sid:
                                 (0, c * tiles_per_core + i, 0)),
                pl.BlockSpec((6, tile_m, LANE),
                             lambda c, i, vc, oc, sid:
                                 (0, c * tiles_per_core + i, 0)),
            ],
            out_specs=pl.BlockSpec((None, 6, 8, LANE),
                                   lambda c, i, vc, oc, sid: (c, 0, 0, 0)),
        ),
        compiler_params=pltpu.CompilerParams(
            dimension_semantics=("parallel", "arbitrary")),
    )(valid_cnt, obj_cnt, seg_ids_j, anc_flat, pred3, tgt3)

    sums = jnp.sum(out, axis=(0, 2, 3))     # (6,) partial sums / counts
    n_noobj = sums[1]
    n_obj = sums[3]
    no_object_loss = sums[0] / n_noobj
    object_loss = sums[2] / n_obj
    box_loss = sums[4] / (4.0 * n_obj)
    class_loss = sums[5] / n_obj
    # all lambda_* are 1 in the reference module
    return box_loss + object_loss + no_object_loss + class_loss


# ------------------------- pure-JAX reference ------------------------------
def _iou_midpoint_ref(b1, b2):
    b1x1 = b1[..., 0:1] - b1[..., 2:3] / 2
    b1y1 = b1[..., 1:2] - b1[..., 3:4] / 2
    b1x2 = b1[..., 0:1] + b1[..., 2:3] / 2
    b1y2 = b1[..., 1:2] + b1[..., 3:4] / 2
    b2x1 = b2[..., 0:1] - b2[..., 2:3] / 2
    b2y1 = b2[..., 1:2] - b2[..., 3:4] / 2
    b2x2 = b2[..., 0:1] + b2[..., 2:3] / 2
    b2y2 = b2[..., 1:2] + b2[..., 3:4] / 2
    wi = jnp.clip(jnp.minimum(b1x2, b2x2) - jnp.maximum(b1x1, b2x1), 0.0)
    hi = jnp.clip(jnp.minimum(b1y2, b2y2) - jnp.maximum(b1y1, b2y1), 0.0)
    inter = wi * hi
    a1 = jnp.abs((b1x2 - b1x1) * (b1y2 - b1y1))
    a2 = jnp.abs((b2x2 - b2x1) * (b2y2 - b2y1))
    return inter / (a1 + a2 - inter + 1e-6)


def yolo_loss_ref(predictions, targets, anchors):
    obj = (targets[..., 0] == 1)[..., None]
    noobj = (targets[..., 0] == 0)[..., None]
    p0 = predictions[..., 0:1]
    t0 = targets[..., 0:1]

    bce = jnp.maximum(p0, 0.0) - p0 * t0 + jnp.log(1.0 + jnp.exp(-jnp.abs(p0)))
    no_object_loss = jnp.sum(jnp.where(noobj, bce, 0.0)) / jnp.sum(noobj)

    anc = anchors.reshape(1, 3, 1, 1, 2)
    box_preds = jnp.concatenate(
        [_sig(predictions[..., 1:3]), jnp.exp(predictions[..., 3:5] * anc)], axis=-1)
    iou = _iou_midpoint_ref(box_preds, targets[..., 1:5])
    object_loss = jnp.sum(jnp.where(obj, (_sig(p0) - iou * t0) ** 2, 0.0)) / jnp.sum(obj)

    pbox = jnp.concatenate([_sig(predictions[..., 1:3]), predictions[..., 3:5]], axis=-1)
    tbox = jnp.concatenate(
        [targets[..., 1:3], jnp.log(1e-16 + targets[..., 3:5] / anc)], axis=-1)
    box_loss = jnp.sum(jnp.where(obj, (pbox - tbox) ** 2, 0.0)) / (4.0 * jnp.sum(obj))

    logits = predictions[..., 5:]
    lse = jax.nn.logsumexp(logits, axis=-1, keepdims=True)
    tgt_logit = jnp.take_along_axis(logits, targets[..., 5:6].astype(jnp.int32), axis=-1)
    class_loss = jnp.sum(jnp.where(obj, lse - tgt_logit, 0.0)) / jnp.sum(obj)

    return box_loss + object_loss + no_object_loss + class_loss


if __name__ == "__main__":
    B, A, S, C = 2, 3, 8, 5          # small shapes; P = 5 + C
    P = 5 + C
    key = jax.random.PRNGKey(0)
    kp, kprob, kxy, kwh, kcls, kanc = jax.random.split(key, 6)

    predictions = jax.random.normal(kp, (B, A, S, S, P), dtype=jnp.float32)
    prob = jax.random.bernoulli(kprob, 0.3, (B, A, S, S, 1)).astype(jnp.float32)
    xy = jax.random.uniform(kxy, (B, A, S, S, 2), minval=0.05, maxval=0.95)
    wh = jax.random.uniform(kwh, (B, A, S, S, 2), minval=0.1, maxval=2.0)
    cls = jax.random.randint(kcls, (B, A, S, S, 1), 0, C).astype(jnp.float32)
    targets = jnp.concatenate([prob, xy, wh, cls], axis=-1).astype(jnp.float32)
    anchors = jax.random.uniform(kanc, (A, 2), minval=0.2, maxval=1.5).astype(jnp.float32)

    loss = jax.block_until_ready(yolo_loss(predictions, targets, anchors))
    loss_ref = jax.block_until_ready(yolo_loss_ref(predictions, targets, anchors))

    np.testing.assert_allclose(np.asarray(loss), np.asarray(loss_ref),
                               rtol=2e-4, atol=2e-4)
    print("KERNEL_OK")
</pallas_src>

<mosaic_0001>
module attributes {stable_mosaic.version = 11 : i64} {
  func.func @_yolo_loss_kernel(%arg0: i32, %arg1: i32, %arg2: memref<4xi32, #tpu.memory_space<smem>>, %arg3: memref<4xi32, #tpu.memory_space<smem>>, %arg4: memref<4xi32, #tpu.memory_space<smem>>, %arg5: memref<6xf32, #tpu.memory_space<smem>>, %arg6: memref<10x32x128xf32, #tpu.memory_space<vmem>>, %arg7: memref<6x32x128xf32, #tpu.memory_space<vmem>>, %arg8: memref<1x6x8x128xf32, #tpu.memory_space<vmem>>) attributes {dimension_semantics = [#tpu.dimension_semantics<parallel>, #tpu.dimension_semantics<arbitrary>], iteration_bounds = array<i64: 2, 2>, scalar_prefetch = 3 : i64, scratch_operands = 0 : i64, tpu.core_type = #tpu.core_type<tc>, window_params = [{transform_indices = @transform_0, window_bounds = array<i64: 6>}, {transform_indices = @transform_1, window_bounds = array<i64: 10, 32, 128>}, {transform_indices = @transform_2, window_bounds = array<i64: 6, 32, 128>}, {transform_indices = @transform_3, window_bounds = array<i64: 1, 6, 8, 128>}]} {
    %c2_i32 = arith.constant 2 : i32
    %0 = arith.muli %arg0, %c2_i32 : i32
    %1 = arith.addi %0, %arg1 : i32
    %c0_i32 = arith.constant 0 : i32
    %2 = arith.cmpi eq, %arg1, %c0_i32 : i32
    %3 = arith.extui %2 : i1 to i32
    %c0_i32_0 = arith.constant 0 : i32
    %4 = arith.cmpi ne, %3, %c0_i32_0 : i32
    scf.if %4 {
      %cst_38 = arith.constant 0.000000e+00 : f32
      %87 = vector.broadcast %cst_38 : f32 to vector<6x8x128xf32>
      %c0_39 = arith.constant 0 : index
      %c0_40 = arith.constant 0 : index
      %c0_41 = arith.constant 0 : index
      %c0_42 = arith.constant 0 : index
      %88 = vector.load %arg8[%c0_39, %c0_40, %c0_41, %c0_42] : memref<1x6x8x128xf32, #tpu.memory_space<vmem>>, vector<1x6x8x128xf32>
      %89 = vector.shape_cast %88 : vector<1x6x8x128xf32> to vector<6x8x128xf32>
      %90 = vector.shape_cast %87 : vector<6x8x128xf32> to vector<1x6x8x128xf32>
      tpu.vector_store %arg8[%c0_39, %c0_40, %c0_41, %c0_42], %90 {strides = array<i32>} : memref<1x6x8x128xf32, #tpu.memory_space<vmem>>, vector<1x6x8x128xf32>,
    } else {
    }
    %c0 = arith.constant 0 : index
    %c0_1 = arith.constant 0 : index
    %c0_2 = arith.constant 0 : index
    %5 = vector.load %arg6[%c0, %c0_1, %c0_2] : memref<10x32x128xf32, #tpu.memory_space<vmem>>, vector<1x32x128xf32>
    %6 = vector.shape_cast %5 : vector<1x32x128xf32> to vector<32x128xf32>
    %c0_3 = arith.constant 0 : index
    %c0_4 = arith.constant 0 : index
    %c0_5 = arith.constant 0 : index
    %7 = vector.load %arg7[%c0_3, %c0_4, %c0_5] : memref<6x32x128xf32, #tpu.memory_space<vmem>>, vector<1x32x128xf32>
    %8 = vector.shape_cast %7 : vector<1x32x128xf32> to vector<32x128xf32>
    %9 = tpu.iota {dimensions = array<i32: 0>} : vector<32x128xi32>
    %c128_i32 = arith.constant 128 : i32
    %10 = vector.broadcast %c128_i32 : i32 to vector<32x128xi32>
    %11 = arith.muli %9, %10 : vector<32x128xi32>
    %12 = tpu.iota {dimensions = array<i32: 1>} : vector<32x128xi32>
    %13 = arith.addi %11, %12 : vector<32x128xi32>
    %14 = arith.index_cast %1 : i32 to index
    %15 = memref.load %arg2[%14] : memref<4xi32, #tpu.memory_space<smem>>
    %16 = vector.broadcast %15 : i32 to vector<32x128xi32>
    %17 = arith.cmpi slt, %13, %16 : vector<32x128xi32>
    %cst = arith.constant 1.000000e+00 : f32
    %18 = vector.broadcast %cst : f32 to vector<32x128xf32>
    %19 = arith.cmpf oeq, %8, %18 : vector<32x128xf32>
    %20 = arith.andi %19, %17 : vector<32x128xi1>
    %cst_6 = arith.constant 1.000000e+00 : f32
    %cst_7 = arith.constant 0.000000e+00 : f32
    %21 = vector.broadcast %cst_6 : f32 to vector<32x128xf32>
    %22 = vector.broadcast %cst_7 : f32 to vector<32x128xf32>
    %23 = arith.select %20, %21, %22 : vector<32x128xi1>, vector<32x128xf32>
    %cst_8 = arith.constant 0.000000e+00 : f32
    %24 = vector.broadcast %cst_8 : f32 to vector<32x128xf32>
    %25 = arith.cmpf oeq, %8, %24 : vector<32x128xf32>
    %26 = arith.andi %25, %17 : vector<32x128xi1>
    %cst_9 = arith.constant 1.000000e+00 : f32
    %cst_10 = arith.constant 0.000000e+00 : f32
    %27 = vector.broadcast %cst_9 : f32 to vector<32x128xf32>
    %28 = vector.broadcast %cst_10 : f32 to vector<32x128xf32>
    %29 = arith.select %26, %27, %28 : vector<32x128xi1>, vector<32x128xf32>
    %cst_11 = arith.constant 0.000000e+00 : f32
    %30 = vector.broadcast %cst_11 : f32 to vector<32x128xf32>
    %31 = arith.maximumf %6, %30 : vector<32x128xf32>
    %32 = arith.mulf %6, %8 : vector<32x128xf32>
    %33 = arith.subf %31, %32 : vector<32x128xf32>
    %34 = math.absf %6 : vector<32x128xf32>
    %cst_12 = arith.constant 0.000000e+00 : f32
    %35 = vector.broadcast %cst_12 : f32 to vector<32x128xf32>
    %36 = arith.subf %35, %34 : vector<32x128xf32>
    %37 = math.exp %36 : vector<32x128xf32>
    %cst_13 = arith.constant 1.000000e+00 : f32
    %38 = vector.broadcast %cst_13 : f32 to vector<32x128xf32>
    %39 = arith.addf %38, %37 : vector<32x128xf32>
    %40 = math.log %39 : vector<32x128xf32>
    %41 = arith.addf %33, %40 : vector<32x128xf32>
    %c0_14 = arith.constant 0 : index
    %c0_15 = arith.constant 0 : index
    %c0_16 = arith.constant 0 : index
    %c0_17 = arith.constant 0 : index
    %42 = vector.load %arg8[%c0_14, %c0_15, %c0_16, %c0_17] : memref<1x6x8x128xf32, #tpu.memory_space<vmem>>, vector<1x1x8x128xf32>
    %43 = vector.shape_cast %42 : vector<1x1x8x128xf32> to vector<8x128xf32>
    %44 = arith.mulf %41, %29 : vector<32x128xf32>
    %45 = vector.extract_strided_slice %44 {offsets = [0, 0], sizes = [8, 128], strides = [1, 1]} : vector<32x128xf32> to vector<8x128xf32>
    %46 = vector.extract_strided_slice %44 {offsets = [8, 0], sizes = [8, 128], strides = [1, 1]} : vector<32x128xf32> to vector<8x128xf32>
    %47 = arith.addf %45, %46 : vector<8x128xf32>
    %48 = vector.extract_strided_slice %44 {offsets = [16, 0], sizes = [8, 128], strides = [1, 1]} : vector<32x128xf32> to vector<8x128xf32>
    %49 = arith.addf %47, %48 : vector<8x128xf32>
    %50 = vector.extract_strided_slice %44 {offsets = [24, 0], sizes = [8, 128], strides = [1, 1]} : vector<32x128xf32> to vector<8x128xf32>
    %51 = arith.addf %49, %50 : vector<8x128xf32>
    %52 = arith.addf %43, %51 : vector<8x128xf32>
    %c0_18 = arith.constant 0 : index
    %c0_19 = arith.constant 0 : index
    %c0_20 = arith.constant 0 : index
    %c0_21 = arith.constant 0 : index
    %53 = vector.load %arg8[%c0_18, %c0_19, %c0_20, %c0_21] : memref<1x6x8x128xf32, #tpu.memory_space<vmem>>, vector<1x1x8x128xf32>
    %54 = vector.shape_cast %53 : vector<1x1x8x128xf32> to vector<8x128xf32>
    %55 = vector.shape_cast %52 : vector<8x128xf32> to vector<1x1x8x128xf32>
    tpu.vector_store %arg8[%c0_18, %c0_19, %c0_20, %c0_21], %55 {strides = array<i32>} : memref<1x6x8x128xf32, #tpu.memory_space<vmem>>, vector<1x1x8x128xf32>,
    %c0_22 = arith.constant 0 : index
    %c1 = arith.constant 1 : index
    %c0_23 = arith.constant 0 : index
    %c0_24 = arith.constant 0 : index
    %56 = vector.load %arg8[%c0_22, %c1, %c0_23, %c0_24] : memref<1x6x8x128xf32, #tpu.memory_space<vmem>>, vector<1x1x8x128xf32>
    %57 = vector.shape_cast %56 : vector<1x1x8x128xf32> to vector<8x128xf32>
    %58 = vector.extract_strided_slice %29 {offsets = [0, 0], sizes = [8, 128], strides = [1, 1]} : vector<32x128xf32> to vector<8x128xf32>
    %59 = vector.extract_strided_slice %29 {offsets = [8, 0], sizes = [8, 128], strides = [1, 1]} : vector<32x128xf32> to vector<8x128xf32>
    %60 = arith.addf %58, %59 : vector<8x128xf32>
    %61 = vector.extract_strided_slice %29 {offsets = [16, 0], sizes = [8, 128], strides = [1, 1]} : vector<32x128xf32> to vector<8x128xf32>
    %62 = arith.addf %60, %61 : vector<8x128xf32>
    %63 = vector.extract_strided_slice %29 {offsets = [24, 0], sizes = [8, 128], strides = [1, 1]} : vector<32x128xf32> to vector<8x128xf32>
    %64 = arith.addf %62, %63 : vector<8x128xf32>
    %65 = arith.addf %57, %64 : vector<8x128xf32>
    %c0_25 = arith.constant 0 : index
    %c1_26 = arith.constant 1 : index
    %c0_27 = arith.constant 0 : index
    %c0_28 = arith.constant 0 : index
    %66 = vector.load %arg8[%c0_25, %c1_26, %c0_27, %c0_28] : memref<1x6x8x128xf32, #tpu.memory_space<vmem>>, vector<1x1x8x128xf32>
    %67 = vector.shape_cast %66 : vector<1x1x8x128xf32> to vector<8x128xf32>
    %68 = vector.shape_cast %65 : vector<8x128xf32> to vector<1x1x8x128xf32>
    tpu.vector_store %arg8[%c0_25, %c1_26, %c0_27, %c0_28], %68 {strides = array<i32>} : memref<1x6x8x128xf32, #tpu.memory_space<vmem>>, vector<1x1x8x128xf32>,
    %c0_29 = arith.constant 0 : index
    %c3 = arith.constant 3 : index
    %c0_30 = arith.constant 0 : index
    %c0_31 = arith.constant 0 : index
    %69 = vector.load %arg8[%c0_29, %c3, %c0_30, %c0_31] : memref<1x6x8x128xf32, #tpu.memory_space<vmem>>, vector<1x1x8x128xf32>
    %70 = vector.shape_cast %69 : vector<1x1x8x128xf32> to vector<8x128xf32>
    %71 = vector.extract_strided_slice %23 {offsets = [0, 0], sizes = [8, 128], strides = [1, 1]} : vector<32x128xf32> to vector<8x128xf32>
    %72 = vector.extract_strided_slice %23 {offsets = [8, 0], sizes = [8, 128], strides = [1, 1]} : vector<32x128xf32> to vector<8x128xf32>
    %73 = arith.addf %71, %72 : vector<8x128xf32>
    %74 = vector.extract_strided_slice %23 {offsets = [16, 0], sizes = [8, 128], strides = [1, 1]} : vector<32x128xf32> to vector<8x128xf32>
    %75 = arith.addf %73, %74 : vector<8x128xf32>
    %76 = vector.extract_strided_slice %23 {offsets = [24, 0], sizes = [8, 128], strides = [1, 1]} : vector<32x128xf32> to vector<8x128xf32>
    %77 = arith.addf %75, %76 : vector<8x128xf32>
    %78 = arith.addf %70, %77 : vector<8x128xf32>
    %c0_32 = arith.constant 0 : index
    %c3_33 = arith.constant 3 : index
    %c0_34 = arith.constant 0 : index
    %c0_35 = arith.constant 0 : index
    %79 = vector.load %arg8[%c0_32, %c3_33, %c0_34, %c0_35] : memref<1x6x8x128xf32, #tpu.memory_space<vmem>>, vector<1x1x8x128xf32>
    %80 = vector.shape_cast %79 : vector<1x1x8x128xf32> to vector<8x128xf32>
    %81 = vector.shape_cast %78 : vector<8x128xf32> to vector<1x1x8x128xf32>
    tpu.vector_store %arg8[%c0_32, %c3_33, %c0_34, %c0_35], %81 {strides = array<i32>} : memref<1x6x8x128xf32, #tpu.memory_space<vmem>>, vector<1x1x8x128xf32>,
    %82 = arith.index_cast %1 : i32 to index
    %83 = memref.load %arg3[%82] : memref<4xi32, #tpu.memory_space<smem>>
    %c0_i32_36 = arith.constant 0 : i32
    %84 = arith.cmpi sgt, %83, %c0_i32_36 : i32
    %85 = arith.extui %84 : i1 to i32
    %c0_i32_37 = arith.constant 0 : i32
    %86 = arith.cmpi ne, %85, %c0_i32_37 : i32
    scf.if %86 {
      %87 = arith.index_cast %1 : i32 to index
      %88 = memref.load %arg4[%87] : memref<4xi32, #tpu.memory_space<smem>>
      %c2_i32_38 = arith.constant 2 : i32
      %89 = arith.muli %88, %c2_i32_38 : i32
      %90 = arith.index_cast %89 : i32 to index
      %91 = memref.load %arg5[%90] : memref<6xf32, #tpu.memory_space<smem>>
      %c1_i32 = arith.constant 1 : i32
      %92 = arith.addi %89, %c1_i32 : i32
      %93 = arith.index_cast %92 : i32 to index
      %94 = memref.load %arg5[%93] : memref<6xf32, #tpu.memory_space<smem>>
      %c1_39 = arith.constant 1 : index
      %c0_40 = arith.constant 0 : index
      %c0_41 = arith.constant 0 : index
      %95 = vector.load %arg6[%c1_39, %c0_40, %c0_41] : memref<10x32x128xf32, #tpu.memory_space<vmem>>, vector<1x32x128xf32>
      %96 = vector.shape_cast %95 : vector<1x32x128xf32> to vector<32x128xf32>
      %c2 = arith.constant 2 : index
      %c0_42 = arith.constant 0 : index
      %c0_43 = arith.constant 0 : index
      %97 = vector.load %arg6[%c2, %c0_42, %c0_43] : memref<10x32x128xf32, #tpu.memory_space<vmem>>, vector<1x32x128xf32>
      %98 = vector.shape_cast %97 : vector<1x32x128xf32> to vector<32x128xf32>
      %c3_44 = arith.constant 3 : index
      %c0_45 = arith.constant 0 : index
      %c0_46 = arith.constant 0 : index
      %99 = vector.load %arg6[%c3_44, %c0_45, %c0_46] : memref<10x32x128xf32, #tpu.memory_space<vmem>>, vector<1x32x128xf32>
      %100 = vector.shape_cast %99 : vector<1x32x128xf32> to vector<32x128xf32>
      %c4 = arith.constant 4 : index
      %c0_47 = arith.constant 0 : index
      %c0_48 = arith.constant 0 : index
      %101 = vector.load %arg6[%c4, %c0_47, %c0_48] : memref<10x32x128xf32, #tpu.memory_space<vmem>>, vector<1x32x128xf32>
      %102 = vector.shape_cast %101 : vector<1x32x128xf32> to vector<32x128xf32>
      %c1_49 = arith.constant 1 : index
      %c0_50 = arith.constant 0 : index
      %c0_51 = arith.constant 0 : index
      %103 = vector.load %arg7[%c1_49, %c0_50, %c0_51] : memref<6x32x128xf32, #tpu.memory_space<vmem>>, vector<1x32x128xf32>
      %104 = vector.shape_cast %103 : vector<1x32x128xf32> to vector<32x128xf32>
      %c2_52 = arith.constant 2 : index
      %c0_53 = arith.constant 0 : index
      %c0_54 = arith.constant 0 : index
      %105 = vector.load %arg7[%c2_52, %c0_53, %c0_54] : memref<6x32x128xf32, #tpu.memory_space<vmem>>, vector<1x32x128xf32>
      %106 = vector.shape_cast %105 : vector<1x32x128xf32> to vector<32x128xf32>
      %c3_55 = arith.constant 3 : index
      %c0_56 = arith.constant 0 : index
      %c0_57 = arith.constant 0 : index
      %107 = vector.load %arg7[%c3_55, %c0_56, %c0_57] : memref<6x32x128xf32, #tpu.memory_space<vmem>>, vector<1x32x128xf32>
      %108 = vector.shape_cast %107 : vector<1x32x128xf32> to vector<32x128xf32>
      %c4_58 = arith.constant 4 : index
      %c0_59 = arith.constant 0 : index
      %c0_60 = arith.constant 0 : index
      %109 = vector.load %arg7[%c4_58, %c0_59, %c0_60] : memref<6x32x128xf32, #tpu.memory_space<vmem>>, vector<1x32x128xf32>
      %110 = vector.shape_cast %109 : vector<1x32x128xf32> to vector<32x128xf32>
      %cst_61 = arith.constant 0.000000e+00 : f32
      %111 = vector.broadcast %cst_61 : f32 to vector<32x128xf32>
      %112 = arith.subf %111, %96 : vector<32x128xf32>
      %113 = math.exp %112 : vector<32x128xf32>
      %cst_62 = arith.constant 1.000000e+00 : f32
      %114 = vector.broadcast %cst_62 : f32 to vector<32x128xf32>
      %115 = arith.addf %114, %113 : vector<32x128xf32>
      %cst_63 = arith.constant 1.000000e+00 : f32
      %116 = vector.broadcast %cst_63 : f32 to vector<32x128xf32>
      %117 = arith.divf %116, %115 : vector<32x128xf32>
      %cst_64 = arith.constant 0.000000e+00 : f32
      %118 = vector.broadcast %cst_64 : f32 to vector<32x128xf32>
      %119 = arith.subf %118, %98 : vector<32x128xf32>
      %120 = math.exp %119 : vector<32x128xf32>
      %cst_65 = arith.constant 1.000000e+00 : f32
      %121 = vector.broadcast %cst_65 : f32 to vector<32x128xf32>
      %122 = arith.addf %121, %120 : vector<32x128xf32>
      %cst_66 = arith.constant 1.000000e+00 : f32
      %123 = vector.broadcast %cst_66 : f32 to vector<32x128xf32>
      %124 = arith.divf %123, %122 : vector<32x128xf32>
      %125 = vector.broadcast %91 : f32 to vector<32x128xf32>
      %126 = arith.mulf %100, %125 : vector<32x128xf32>
      %127 = math.exp %126 : vector<32x128xf32>
      %128 = vector.broadcast %94 : f32 to vector<32x128xf32>
      %129 = arith.mulf %102, %128 : vector<32x128xf32>
      %130 = math.exp %129 : vector<32x128xf32>
      %cst_67 = arith.constant 5.000000e-01 : f32
      %131 = vector.broadcast %cst_67 : f32 to vector<32x128xf32>
      %132 = arith.mulf %127, %131 : vector<32x128xf32>
      %133 = arith.subf %117, %132 : vector<32x128xf32>
      %cst_68 = arith.constant 5.000000e-01 : f32
      %134 = vector.broadcast %cst_68 : f32 to vector<32x128xf32>
      %135 = arith.mulf %127, %134 : vector<32x128xf32>
      %136 = arith.addf %117, %135 : vector<32x128xf32>
      %cst_69 = arith.constant 5.000000e-01 : f32
      %137 = vector.broadcast %cst_69 : f32 to vector<32x128xf32>
      %138 = arith.mulf %130, %137 : vector<32x128xf32>
      %139 = arith.subf %124, %138 : vector<32x128xf32>
      %cst_70 = arith.constant 5.000000e-01 : f32
      %140 = vector.broadcast %cst_70 : f32 to vector<32x128xf32>
      %141 = arith.mulf %130, %140 : vector<32x128xf32>
      %142 = arith.addf %124, %141 : vector<32x128xf32>
      %cst_71 = arith.constant 5.000000e-01 : f32
      %143 = vector.broadcast %cst_71 : f32 to vector<32x128xf32>
      %144 = arith.mulf %108, %143 : vector<32x128xf32>
      %145 = arith.subf %104, %144 : vector<32x128xf32>
      %cst_72 = arith.constant 5.000000e-01 : f32
      %146 = vector.broadcast %cst_72 : f32 to vector<32x128xf32>
      %147 = arith.mulf %108, %146 : vector<32x128xf32>
      %148 = arith.addf %104, %147 : vector<32x128xf32>
      %cst_73 = arith.constant 5.000000e-01 : f32
      %149 = vector.broadcast %cst_73 : f32 to vector<32x128xf32>
      %150 = arith.mulf %110, %149 : vector<32x128xf32>
      %151 = arith.subf %106, %150 : vector<32x128xf32>
      %cst_74 = arith.constant 5.000000e-01 : f32
      %152 = vector.broadcast %cst_74 : f32 to vector<32x128xf32>
      %153 = arith.mulf %110, %152 : vector<32x128xf32>
      %154 = arith.addf %106, %153 : vector<32x128xf32>
      %155 = arith.minimumf %136, %148 : vector<32x128xf32>
      %156 = arith.maximumf %133, %145 : vector<32x128xf32>
      %157 = arith.subf %155, %156 : vector<32x128xf32>
      %cst_75 = arith.constant 0.000000e+00 : f32
      %158 = vector.broadcast %cst_75 : f32 to vector<32x128xf32>
      %159 = arith.maximumf %157, %158 : vector<32x128xf32>
      %160 = arith.minimumf %142, %154 : vector<32x128xf32>
      %161 = arith.maximumf %139, %151 : vector<32x128xf32>
      %162 = arith.subf %160, %161 : vector<32x128xf32>
      %cst_76 = arith.constant 0.000000e+00 : f32
      %163 = vector.broadcast %cst_76 : f32 to vector<32x128xf32>
      %164 = arith.maximumf %162, %163 : vector<32x128xf32>
      %165 = arith.mulf %159, %164 : vector<32x128xf32>
      %166 = arith.subf %136, %133 : vector<32x128xf32>
      %167 = arith.subf %142, %139 : vector<32x128xf32>
      %168 = arith.mulf %166, %167 : vector<32x128xf32>
      %169 = math.absf %168 : vector<32x128xf32>
      %170 = arith.subf %148, %145 : vector<32x128xf32>
      %171 = arith.subf %154, %151 : vector<32x128xf32>
      %172 = arith.mulf %170, %171 : vector<32x128xf32>
      %173 = math.absf %172 : vector<32x128xf32>
      %174 = arith.addf %169, %173 : vector<32x128xf32>
      %175 = arith.subf %174, %165 : vector<32x128xf32>
      %cst_77 = arith.constant 9.99999997E-7 : f32
      %176 = vector.broadcast %cst_77 : f32 to vector<32x128xf32>
      %177 = arith.addf %175, %176 : vector<32x128xf32>
      %178 = arith.divf %165, %177 : vector<32x128xf32>
      %cst_78 = arith.constant 0.000000e+00 : f32
      %179 = vector.broadcast %cst_78 : f32 to vector<32x128xf32>
      %180 = arith.subf %179, %6 : vector<32x128xf32>
      %181 = math.exp %180 : vector<32x128xf32>
      %cst_79 = arith.constant 1.000000e+00 : f32
      %182 = vector.broadcast %cst_79 : f32 to vector<32x128xf32>
      %183 = arith.addf %182, %181 : vector<32x128xf32>
      %cst_80 = arith.constant 1.000000e+00 : f32
      %184 = vector.broadcast %cst_80 : f32 to vector<32x128xf32>
      %185 = arith.divf %184, %183 : vector<32x128xf32>
      %186 = arith.mulf %178, %8 : vector<32x128xf32>
      %187 = arith.subf %185, %186 : vector<32x128xf32>
      %188 = arith.mulf %187, %187 : vector<32x128xf32>
      %c0_81 = arith.constant 0 : index
      %c2_82 = arith.constant 2 : index
      %c0_83 = arith.constant 0 : index
      %c0_84 = arith.constant 0 : index
      %189 = vector.load %arg8[%c0_81, %c2_82, %c0_83, %c0_84] : memref<1x6x8x128xf32, #tpu.memory_space<vmem>>, vector<1x1x8x128xf32>
      %190 = vector.shape_cast %189 : vector<1x1x8x128xf32> to vector<8x128xf32>
      %191 = arith.mulf %188, %23 : vector<32x128xf32>
      %192 = vector.extract_strided_slice %191 {offsets = [0, 0], sizes = [8, 128], strides = [1, 1]} : vector<32x128xf32> to vector<8x128xf32>
      %193 = vector.extract_strided_slice %191 {offsets = [8, 0], sizes = [8, 128], strides = [1, 1]} : vector<32x128xf32> to vector<8x128xf32>
      %194 = arith.addf %192, %193 : vector<8x128xf32>
      %195 = vector.extract_strided_slice %191 {offsets = [16, 0], sizes = [8, 128], strides = [1, 1]} : vector<32x128xf32> to vector<8x128xf32>
      %196 = arith.addf %194, %195 : vector<8x128xf32>
      %197 = vector.extract_strided_slice %191 {offsets = [24, 0], sizes = [8, 128], strides = [1, 1]} : vector<32x128xf32> to vector<8x128xf32>
      %198 = arith.addf %196, %197 : vector<8x128xf32>
      %199 = arith.addf %190, %198 : vector<8x128xf32>
      %c0_85 = arith.constant 0 : index
      %c2_86 = arith.constant 2 : index
      %c0_87 = arith.constant 0 : index
      %c0_88 = arith.constant 0 : index
      %200 = vector.load %arg8[%c0_85, %c2_86, %c0_87, %c0_88] : memref<1x6x8x128xf32, #tpu.memory_space<vmem>>, vector<1x1x8x128xf32>
      %201 = vector.shape_cast %200 : vector<1x1x8x128xf32> to vector<8x128xf32>
      %202 = vector.shape_cast %199 : vector<8x128xf32> to vector<1x1x8x128xf32>
      tpu.vector_store %arg8[%c0_85, %c2_86, %c0_87, %c0_88], %202 {strides = array<i32>} : memref<1x6x8x128xf32, #tpu.memory_space<vmem>>, vector<1x1x8x128xf32>,
      %203 = vector.broadcast %91 : f32 to vector<32x128xf32>
      %204 = arith.divf %108, %203 : vector<32x128xf32>
      %cst_89 = arith.constant 1.000000e-16 : f32
      %205 = vector.broadcast %cst_89 : f32 to vector<32x128xf32>
      %206 = arith.addf %205, %204 : vector<32x128xf32>
      %207 = math.log %206 : vector<32x128xf32>
      %208 = vector.broadcast %94 : f32 to vector<32x128xf32>
      %209 = arith.divf %110, %208 : vector<32x128xf32>
      %cst_90 = arith.constant 1.000000e-16 : f32
      %210 = vector.broadcast %cst_90 : f32 to vector<32x128xf32>
      %211 = arith.addf %210, %209 : vector<32x128xf32>
      %212 = math.log %211 : vector<32x128xf32>
      %213 = arith.subf %117, %104 : vector<32x128xf32>
      %214 = arith.mulf %213, %213 : vector<32x128xf32>
      %215 = arith.subf %124, %106 : vector<32x128xf32>
      %216 = arith.mulf %215, %215 : vector<32x128xf32>
      %217 = arith.addf %214, %216 : vector<32x128xf32>
      %218 = arith.subf %100, %207 : vector<32x128xf32>
      %219 = arith.mulf %218, %218 : vector<32x128xf32>
      %220 = arith.addf %217, %219 : vector<32x128xf32>
      %221 = arith.subf %102, %212 : vector<32x128xf32>
      %222 = arith.mulf %221, %221 : vector<32x128xf32>
      %223 = arith.addf %220, %222 : vector<32x128xf32>
      %c0_91 = arith.constant 0 : index
      %c4_92 = arith.constant 4 : index
      %c0_93 = arith.constant 0 : index
      %c0_94 = arith.constant 0 : index
      %224 = vector.load %arg8[%c0_91, %c4_92, %c0_93, %c0_94] : memref<1x6x8x128xf32, #tpu.memory_space<vmem>>, vector<1x1x8x128xf32>
      %225 = vector.shape_cast %224 : vector<1x1x8x128xf32> to vector<8x128xf32>
      %226 = arith.mulf %223, %23 : vector<32x128xf32>
      %227 = vector.extract_strided_slice %226 {offsets = [0, 0], sizes = [8, 128], strides = [1, 1]} : vector<32x128xf32> to vector<8x128xf32>
      %228 = vector.extract_strided_slice %226 {offsets = [8, 0], sizes = [8, 128], strides = [1, 1]} : vector<32x128xf32> to vector<8x128xf32>
      %229 = arith.addf %227, %228 : vector<8x128xf32>
      %230 = vector.extract_strided_slice %226 {offsets = [16, 0], sizes = [8, 128], strides = [1, 1]} : vector<32x128xf32> to vector<8x128xf32>
      %231 = arith.addf %229, %230 : vector<8x128xf32>
      %232 = vector.extract_strided_slice %226 {offsets = [24, 0], sizes = [8, 128], strides = [1, 1]} : vector<32x128xf32> to vector<8x128xf32>
      %233 = arith.addf %231, %232 : vector<8x128xf32>
      %234 = arith.addf %225, %233 : vector<8x128xf32>
      %c0_95 = arith.constant 0 : index
      %c4_96 = arith.constant 4 : index
      %c0_97 = arith.constant 0 : index
      %c0_98 = arith.constant 0 : index
      %235 = vector.load %arg8[%c0_95, %c4_96, %c0_97, %c0_98] : memref<1x6x8x128xf32, #tpu.memory_space<vmem>>, vector<1x1x8x128xf32>
      %236 = vector.shape_cast %235 : vector<1x1x8x128xf32> to vector<8x128xf32>
      %237 = vector.shape_cast %234 : vector<8x128xf32> to vector<1x1x8x128xf32>
      tpu.vector_store %arg8[%c0_95, %c4_96, %c0_97, %c0_98], %237 {strides = array<i32>} : memref<1x6x8x128xf32, #tpu.memory_space<vmem>>, vector<1x1x8x128xf32>,
      %c5 = arith.constant 5 : index
      %c0_99 = arith.constant 0 : index
      %c0_100 = arith.constant 0 : index
      %238 = vector.load %arg7[%c5, %c0_99, %c0_100] : memref<6x32x128xf32, #tpu.memory_space<vmem>>, vector<1x32x128xf32>
      %239 = vector.shape_cast %238 : vector<1x32x128xf32> to vector<32x128xf32>
      %240 = arith.fptosi %239 : vector<32x128xf32> to vector<32x128xi32>
      %c5_101 = arith.constant 5 : index
      %c0_102 = arith.constant 0 : index
      %c0_103 = arith.constant 0 : index
      %241 = vector.load %arg6[%c5_101, %c0_102, %c0_103] : memref<10x32x128xf32, #tpu.memory_space<vmem>>, vector<1x32x128xf32>
      %242 = vector.shape_cast %241 : vector<1x32x128xf32> to vector<32x128xf32>
      %c6 = arith.constant 6 : index
      %c0_104 = arith.constant 0 : index
      %c0_105 = arith.constant 0 : index
      %243 = vector.load %arg6[%c6, %c0_104, %c0_105] : memref<10x32x128xf32, #tpu.memory_space<vmem>>, vector<1x32x128xf32>
      %244 = vector.shape_cast %243 : vector<1x32x128xf32> to vector<32x128xf32>
      %245 = arith.maximumf %242, %244 : vector<32x128xf32>
      %c7 = arith.constant 7 : index
      %c0_106 = arith.constant 0 : index
      %c0_107 = arith.constant 0 : index
      %246 = vector.load %arg6[%c7, %c0_106, %c0_107] : memref<10x32x128xf32, #tpu.memory_space<vmem>>, vector<1x32x128xf32>
      %247 = vector.shape_cast %246 : vector<1x32x128xf32> to vector<32x128xf32>
      %248 = arith.maximumf %245, %247 : vector<32x128xf32>
      %c8 = arith.constant 8 : index
      %c0_108 = arith.constant 0 : index
      %c0_109 = arith.constant 0 : index
      %249 = vector.load %arg6[%c8, %c0_108, %c0_109] : memref<10x32x128xf32, #tpu.memory_space<vmem>>, vector<1x32x128xf32>
      %250 = vector.shape_cast %249 : vector<1x32x128xf32> to vector<32x128xf32>
      %251 = arith.maximumf %248, %250 : vector<32x128xf32>
      %c9 = arith.constant 9 : index
      %c0_110 = arith.constant 0 : index
      %c0_111 = arith.constant 0 : index
      %252 = vector.load %arg6[%c9, %c0_110, %c0_111] : memref<10x32x128xf32, #tpu.memory_space<vmem>>, vector<1x32x128xf32>
      %253 = vector.shape_cast %252 : vector<1x32x128xf32> to vector<32x128xf32>
      %254 = arith.maximumf %251, %253 : vector<32x128xf32>
      %cst_112 = arith.constant 0.000000e+00 : f32
      %255 = vector.broadcast %cst_112 : f32 to vector<32x128xf32>
      %cst_113 = arith.constant 0.000000e+00 : f32
      %256 = vector.broadcast %cst_113 : f32 to vector<32x128xf32>
      %c5_114 = arith.constant 5 : index
      %c0_115 = arith.constant 0 : index
      %c0_116 = arith.constant 0 : index
      %257 = vector.load %arg6[%c5_114, %c0_115, %c0_116] : memref<10x32x128xf32, #tpu.memory_space<vmem>>, vector<1x32x128xf32>
      %258 = vector.shape_cast %257 : vector<1x32x128xf32> to vector<32x128xf32>
      %259 = arith.subf %258, %254 : vector<32x128xf32>
      %260 = math.exp %259 : vector<32x128xf32>
      %261 = arith.addf %255, %260 : vector<32x128xf32>
      %c0_i32_117 = arith.constant 0 : i32
      %262 = vector.broadcast %c0_i32_117 : i32 to vector<32x128xi32>
      %263 = arith.cmpi eq, %240, %262 : vector<32x128xi32>
      %cst_118 = arith.constant 0.000000e+00 : f32
      %264 = vector.broadcast %cst_118 : f32 to vector<32x128xf32>
      %265 = arith.select %263, %258, %264 : vector<32x128xi1>, vector<32x128xf32>
      %266 = arith.addf %256, %265 : vector<32x128xf32>
      %c6_119 = arith.constant 6 : index
      %c0_120 = arith.constant 0 : index
      %c0_121 = arith.constant 0 : index
      %267 = vector.load %arg6[%c6_119, %c0_120, %c0_121] : memref<10x32x128xf32, #tpu.memory_space<vmem>>, vector<1x32x128xf32>
      %268 = vector.shape_cast %267 : vector<1x32x128xf32> to vector<32x128xf32>
      %269 = arith.subf %268, %254 : vector<32x128xf32>
      %270 = math.exp %269 : vector<32x128xf32>
      %271 = arith.addf %261, %270 : vector<32x128xf32>
      %c1_i32_122 = arith.constant 1 : i32
      %272 = vector.broadcast %c1_i32_122 : i32 to vector<32x128xi32>
      %273 = arith.cmpi eq, %240, %272 : vector<32x128xi32>
      %cst_123 = arith.constant 0.000000e+00 : f32
      %274 = vector.broadcast %cst_123 : f32 to vector<32x128xf32>
      %275 = arith.select %273, %268, %274 : vector<32x128xi1>, vector<32x128xf32>
      %276 = arith.addf %266, %275 : vector<32x128xf32>
      %c7_124 = arith.constant 7 : index
      %c0_125 = arith.constant 0 : index
      %c0_126 = arith.constant 0 : index
      %277 = vector.load %arg6[%c7_124, %c0_125, %c0_126] : memref<10x32x128xf32, #tpu.memory_space<vmem>>, vector<1x32x128xf32>
      %278 = vector.shape_cast %277 : vector<1x32x128xf32> to vector<32x128xf32>
      %279 = arith.subf %278, %254 : vector<32x128xf32>
      %280 = math.exp %279 : vector<32x128xf32>
      %281 = arith.addf %271, %280 : vector<32x128xf32>
      %c2_i32_127 = arith.constant 2 : i32
      %282 = vector.broadcast %c2_i32_127 : i32 to vector<32x128xi32>
      %283 = arith.cmpi eq, %240, %282 : vector<32x128xi32>
      %cst_128 = arith.constant 0.000000e+00 : f32
      %284 = vector.broadcast %cst_128 : f32 to vector<32x128xf32>
      %285 = arith.select %283, %278, %284 : vector<32x128xi1>, vector<32x128xf32>
      %286 = arith.addf %276, %285 : vector<32x128xf32>
      %c8_129 = arith.constant 8 : index
      %c0_130 = arith.constant 0 : index
      %c0_131 = arith.constant 0 : index
      %287 = vector.load %arg6[%c8_129, %c0_130, %c0_131] : memref<10x32x128xf32, #tpu.memory_space<vmem>>, vector<1x32x128xf32>
      %288 = vector.shape_cast %287 : vector<1x32x128xf32> to vector<32x128xf32>
      %289 = arith.subf %288, %254 : vector<32x128xf32>
      %290 = math.exp %289 : vector<32x128xf32>
      %291 = arith.addf %281, %290 : vector<32x128xf32>
      %c3_i32 = arith.constant 3 : i32
      %292 = vector.broadcast %c3_i32 : i32 to vector<32x128xi32>
      %293 = arith.cmpi eq, %240, %292 : vector<32x128xi32>
      %cst_132 = arith.constant 0.000000e+00 : f32
      %294 = vector.broadcast %cst_132 : f32 to vector<32x128xf32>
      %295 = arith.select %293, %288, %294 : vector<32x128xi1>, vector<32x128xf32>
      %296 = arith.addf %286, %295 : vector<32x128xf32>
      %c9_133 = arith.constant 9 : index
      %c0_134 = arith.constant 0 : index
      %c0_135 = arith.constant 0 : index
      %297 = vector.load %arg6[%c9_133, %c0_134, %c0_135] : memref<10x32x128xf32, #tpu.memory_space<vmem>>, vector<1x32x128xf32>
      %298 = vector.shape_cast %297 : vector<1x32x128xf32> to vector<32x128xf32>
      %299 = arith.subf %298, %254 : vector<32x128xf32>
      %300 = math.exp %299 : vector<32x128xf32>
      %301 = arith.addf %291, %300 : vector<32x128xf32>
      %c4_i32 = arith.constant 4 : i32
      %302 = vector.broadcast %c4_i32 : i32 to vector<32x128xi32>
      %303 = arith.cmpi eq, %240, %302 : vector<32x128xi32>
      %cst_136 = arith.constant 0.000000e+00 : f32
      %304 = vector.broadcast %cst_136 : f32 to vector<32x128xf32>
      %305 = arith.select %303, %298, %304 : vector<32x128xi1>, vector<32x128xf32>
      %306 = arith.addf %296, %305 : vector<32x128xf32>
      %307 = math.log %301 : vector<32x128xf32>
      %308 = arith.addf %254, %307 : vector<32x128xf32>
      %309 = arith.subf %308, %306 : vector<32x128xf32>
      %c0_137 = arith.constant 0 : index
      %c5_138 = arith.constant 5 : index
      %c0_139 = arith.constant 0 : index
      %c0_140 = arith.constant 0 : index
      %310 = vector.load %arg8[%c0_137, %c5_138, %c0_139, %c0_140] : memref<1x6x8x128xf32, #tpu.memory_space<vmem>>, vector<1x1x8x128xf32>
      %311 = vector.shape_cast %310 : vector<1x1x8x128xf32> to vector<8x128xf32>
      %312 = arith.mulf %309, %23 : vector<32x128xf32>
      %313 = vector.extract_strided_slice %312 {offsets = [0, 0], sizes = [8, 128], strides = [1, 1]} : vector<32x128xf32> to vector<8x128xf32>
      %314 = vector.extract_strided_slice %312 {offsets = [8, 0], sizes = [8, 128], strides = [1, 1]} : vector<32x128xf32> to vector<8x128xf32>
      %315 = arith.addf %313, %314 : vector<8x128xf32>
      %316 = vector.extract_strided_slice %312 {offsets = [16, 0], sizes = [8, 128], strides = [1, 1]} : vector<32x128xf32> to vector<8x128xf32>
      %317 = arith.addf %315, %316 : vector<8x128xf32>
      %318 = vector.extract_strided_slice %312 {offsets = [24, 0], sizes = [8, 128], strides = [1, 1]} : vector<32x128xf32> to vector<8x128xf32>
      %319 = arith.addf %317, %318 : vector<8x128xf32>
      %320 = arith.addf %311, %319 : vector<8x128xf32>
      %c0_141 = arith.constant 0 : index
      %c5_142 = arith.constant 5 : index
      %c0_143 = arith.constant 0 : index
      %c0_144 = arith.constant 0 : index
      %321 = vector.load %arg8[%c0_141, %c5_142, %c0_143, %c0_144] : memref<1x6x8x128xf32, #tpu.memory_space<vmem>>, vector<1x1x8x128xf32>
      %322 = vector.shape_cast %321 : vector<1x1x8x128xf32> to vector<8x128xf32>
      %323 = vector.shape_cast %320 : vector<8x128xf32> to vector<1x1x8x128xf32>
      tpu.vector_store %arg8[%c0_141, %c5_142, %c0_143, %c0_144], %323 {strides = array<i32>} : memref<1x6x8x128xf32, #tpu.memory_space<vmem>>, vector<1x1x8x128xf32>,
    } else {
    }
    return
  }
  func.func @transform_0(%arg0: i32, %arg1: i32, %arg2: memref<4xi32, #tpu.memory_space<smem>>, %arg3: memref<4xi32, #tpu.memory_space<smem>>, %arg4: memref<4xi32, #tpu.memory_space<smem>>) -> i32 {
    %c0_i32 = arith.constant 0 : i32
    %c0_i32_0 = arith.constant 0 : i32
    return %c0_i32 : i32
  }
  func.func @transform_1(%arg0: i32, %arg1: i32, %arg2: memref<4xi32, #tpu.memory_space<smem>>, %arg3: memref<4xi32, #tpu.memory_space<smem>>, %arg4: memref<4xi32, #tpu.memory_space<smem>>) -> (i32, i32, i32) {
    %c2_i32 = arith.constant 2 : i32
    %0 = arith.muli %arg0, %c2_i32 : i32
    %1 = arith.addi %0, %arg1 : i32
    %c0_i32 = arith.constant 0 : i32
    %c0_i32_0 = arith.constant 0 : i32
    %c0_i32_1 = arith.constant 0 : i32
    return %c0_i32, %1, %c0_i32_0 : i32, i32, i32
  }
  func.func @transform_2(%arg0: i32, %arg1: i32, %arg2: memref<4xi32, #tpu.memory_space<smem>>, %arg3: memref<4xi32, #tpu.memory_space<smem>>, %arg4: memref<4xi32, #tpu.memory_space<smem>>) -> (i32, i32, i32) {
    %c2_i32 = arith.constant 2 : i32
    %0 = arith.muli %arg0, %c2_i32 : i32
    %1 = arith.addi %0, %arg1 : i32
    %c0_i32 = arith.constant 0 : i32
    %c0_i32_0 = arith.constant 0 : i32
    %c0_i32_1 = arith.constant 0 : i32
    return %c0_i32, %1, %c0_i32_0 : i32, i32, i32
  }
  func.func @transform_3(%arg0: i32, %arg1: i32, %arg2: memref<4xi32, #tpu.memory_space<smem>>, %arg3: memref<4xi32, #tpu.memory_space<smem>>, %arg4: memref<4xi32, #tpu.memory_space<smem>>) -> (i32, i32, i32, i32) {
    %c0_i32 = arith.constant 0 : i32
    %c0_i32_0 = arith.constant 0 : i32
    %c0_i32_1 = arith.constant 0 : i32
    %c0_i32_2 = arith.constant 0 : i32
    return %arg0, %c0_i32, %c0_i32_0, %c0_i32_1 : i32, i32, i32, i32
  }
}

</mosaic_0001>

<llo_original>
// kernel: yolo_loss.1
$region0: #{yolo_loss.1}
  #allocation0 [shape = 'u32[]', space=smem, size = 0x4, offset = 0x4, fixed_abs, tag = 'smem constant byte address 0x4 - core index']
  #allocation1 [shape = 'u32[144,128]{1,0:T(1,128)}', space=vmem, size = 0x12000, scoped, tag = 'internal scratch']
  #allocation2 [shape = 's32[1]{0}', space=sflag, size = 0x4, scoped, tag = 'scoped memory for yolo_loss.1']
  #allocation3 [shape = 'u8[512]{0}', space=smem, size = 0x200, scoped, tag = 'prefetched SMEM operand 0']
  #allocation4 [shape = 'u8[512]{0}', space=smem, size = 0x200, scoped, tag = 'prefetched SMEM operand 1']
  #allocation5 [shape = 'u8[512]{0}', space=smem, size = 0x200, scoped, tag = 'prefetched SMEM operand 2']
  %s0 = inlined_call_operand.vmem [shape: s32[4], index: 0, kind: input, shape index: {}]
  %s1 = inlined_call_operand.vmem [shape: s32[4], index: 1, kind: input, shape index: {}]
  %s2 = inlined_call_operand.vmem [shape: s32[4], index: 2, kind: input, shape index: {}]
  %s3 = inlined_call_operand.vmem [shape: f32[6], index: 3, kind: input, shape index: {}]
  %s4 = inlined_call_operand.vmem [shape: f32[10,128,128], index: 4, kind: input, shape index: {}]
  %s5 = inlined_call_operand.vmem [shape: f32[6,128,128], index: 5, kind: input, shape index: {}]
  %s6 = inlined_call_operand.vmem [shape: f32[2,6,8,128], index: 6, kind: output, shape index: {}]
  %s7 = sld [smem:[#allocation0]]
  $region133: #{yolo_loss.1} parent=0
    _
  %s9 = ssub.s32 1, %s7
  %s10 = scalar_select 0, %s9, %s7
  %s11 = sshll.u32 %s0, 4
  %s12 = int_to_ptr.vmem [resolvable:$true] %s11
  %14 = dma.vmem_to_smem %s12, 16, [#allocation3], [#allocation2]
  %s15 = sshll.u32 %s1, 4
  %s16 = int_to_ptr.vmem [resolvable:$true] %s15
  %18 = dma.vmem_to_smem %s16, 16, [#allocation4], [#allocation2]
  %s19 = sshll.u32 %s2, 4
  %s20 = int_to_ptr.vmem [resolvable:$true] %s19
  %22 = dma.vmem_to_smem %s20, 16, [#allocation5], [#allocation2]
  %23 = dma.done [#allocation2], 48
  %24 = sfence
  $region1: #{yolo_loss.1} parent=0
    #allocation6 [shape = 'u8[512]{0}', space=smem, size = 0x200, scoped, tag = 'input window, operand 3, single buffered']
    #allocation7 [shape = 's32[2]{0}', space=sflag, size = 0x8, scoped, tag = 'scoped memory for yolo_loss.1']
    #allocation8 [shape = 'u8[327680]{0}', space=vmem, size = 0x50000, scoped, tag = 'input window, operand 4']
    #allocation9 [shape = 'u8[196608]{0}', space=vmem, size = 0x30000, scoped, tag = 'input window, operand 5']
    %25 = vsyncpa [#allocation7], 0
    loop: start=0, step=1, limit=6
    $region2: #{yolo_loss.1} parent=1 // loop_pre_header
      _
    $region3: #{yolo_loss.1} parent=1 // loop_header
      %s27 = sphi 0, %s31
      %p28 = scmp.ge.s32.totalorder %s27, 6
      %s34 = sphi 0, %s46
      %s35 = sphi 0, %s42
      %s36 = sphi 0, %s34
      %s37 = sphi 0, %s35
      %s38 = sphi 0, %s36
      %s39 = sphi 0, %s37
      %s47 = sphi 0, %s47
      %s49 = sphi 0, %s47
      %s50 = sphi 0, %s49
      %s64 = sphi 0, %s50
      %s74 = sphi 0, %s76
      %s77 = sphi 0, %s74
      %s78 = sphi 0, %s77
      %s94 = sphi 0, %s78
      %s104 = sphi 0, %s106
      %s107 = sphi 0, %s104
      %s108 = sphi 0, %s107
      %s124 = sphi 0, %s108
      %s130 = sphi 0, %s132
      %s133 = sphi 0, %s130
      %s134 = sphi 0, %s133
      %s150 = sphi 0, %s134
    $region4: #{yolo_loss.1} parent=1 // loop_header_branch
      %30 = sbr.rel (%p28) target = $region8
    $region5: #{yolo_loss.1} parent=1 // loop_body
      %s32 = ssub.s32 %s27, 1
      %s33 = ssub.s32 %s27, 2
      %s40 = sadd.s32 1, %s35
      %p41 = scmp.ge.s32.totalorder %s40, 2
      %s42 = scalar_select %p41, 0, %s40
      %s43 = sadd.s32 1, %s34
      %s44 = scalar_select %p41, %s43, %s34
      %p45 = scmp.ge.s32.totalorder %s44, 2
      %s46 = scalar_select %p45, 0, %s44
      %s48 = sadd.s32 %s47, 1
      %p51 = scmp.eq.s32.totalorder %s27, 3
      %p52 = scmp.ne.s32.totalorder %s47, %s49
      %p53 = scmp.eq.s32.totalorder %s27, 0
      %p54 = por %p52, %p53
      %p55 = scmp.ne.s32.totalorder %s47, %s49
      %p56 = scmp.eq.s32.totalorder %s32, 3
      %p57 = por %p55, %p56
      %p58 = scmp.ne.s32.totalorder %s49, %s50
      %p59 = scmp.eq.s32.totalorder %s32, 0
      %p60 = por %p58, %p59
      %p61 = scmp.ne.s32.totalorder %s49, %s50
      %p62 = scmp.eq.s32.totalorder %s33, 3
      %p63 = por %p61, %p62
      %p65 = scmp.ne.s32.totalorder %s50, %s64
      %p66 = scmp.eq.s32.totalorder %s33, 0
      %p67 = por %p65, %p66
      %s68 = smul.u32 %s34, 2
      %s69 = sadd.s32 %s68, %s35
      %s70 = smul.u32 %s46, 2
      %s71 = sadd.s32 %s70, %s42
      %s72 = ssub.s32 %s69, %s71
      %p73 = scmp.eq.s32.totalorder %s72, 0
      %s75 = sadd.s32 %s74, 1
      %s76 = scalar_select %p73, %s74, %s75
      %p79 = pneg %p73
      %p80 = scmp.eq.s32.totalorder %s27, 3
      %p81 = por %p79, %p80
      %p82 = scmp.ne.s32.totalorder %s74, %s77
      %p83 = scmp.eq.s32.totalorder %s27, 0
      %p84 = por %p82, %p83
      %p85 = scmp.ne.s32.totalorder %s74, %s77
      %p86 = scmp.eq.s32.totalorder %s32, 3
      %p87 = por %p85, %p86
      %p88 = scmp.ne.s32.totalorder %s77, %s78
      %p89 = scmp.eq.s32.totalorder %s32, 0
      %p90 = por %p88, %p89
      %p91 = scmp.ne.s32.totalorder %s77, %s78
      %p92 = scmp.eq.s32.totalorder %s33, 3
      %p93 = por %p91, %p92
      %p95 = scmp.ne.s32.totalorder %s78, %s94
      %p96 = scmp.eq.s32.totalorder %s33, 0
      %p97 = por %p95, %p96
      %s98 = smul.u32 %s34, 2
      %s99 = sadd.s32 %s98, %s35
      %s100 = smul.u32 %s46, 2
      %s101 = sadd.s32 %s100, %s42
      %s102 = ssub.s32 %s99, %s101
      %p103 = scmp.eq.s32.totalorder %s102, 0
      %s105 = sadd.s32 %s104, 1
      %s106 = scalar_select %p103, %s104, %s105
      %p109 = pneg %p103
      %p110 = scmp.eq.s32.totalorder %s27, 3
      %p111 = por %p109, %p110
      %p112 = scmp.ne.s32.totalorder %s104, %s107
      %p113 = scmp.eq.s32.totalorder %s27, 0
      %p114 = por %p112, %p113
      %p115 = scmp.ne.s32.totalorder %s104, %s107
      %p116 = scmp.eq.s32.totalorder %s32, 3
      %p117 = por %p115, %p116
      %p118 = scmp.ne.s32.totalorder %s107, %s108
      %p119 = scmp.eq.s32.totalorder %s32, 0
      %p120 = por %p118, %p119
      %p121 = scmp.ne.s32.totalorder %s107, %s108
      %p122 = scmp.eq.s32.totalorder %s33, 3
      %p123 = por %p121, %p122
      %p125 = scmp.ne.s32.totalorder %s108, %s124
      %p126 = scmp.eq.s32.totalorder %s33, 0
      %p127 = por %p125, %p126
      %s128 = ssub.s32 %s34, %s46
      %p129 = scmp.eq.s32.totalorder %s128, 0
      %s131 = sadd.s32 %s130, 1
      %s132 = scalar_select %p129, %s130, %s131
      %p135 = pneg %p129
      %p136 = scmp.eq.s32.totalorder %s27, 3
      %p137 = por %p135, %p136
      %p138 = scmp.ne.s32.totalorder %s130, %s133
      %p139 = scmp.eq.s32.totalorder %s27, 0
      %p140 = por %p138, %p139
      %p141 = scmp.ne.s32.totalorder %s130, %s133
      %p142 = scmp.eq.s32.totalorder %s32, 3
      %p143 = por %p141, %p142
      %p144 = scmp.ne.s32.totalorder %s133, %s134
      %p145 = scmp.eq.s32.totalorder %s32, 0
      %p146 = por %p144, %p145
      %p147 = scmp.ne.s32.totalorder %s133, %s134
      %p148 = scmp.eq.s32.totalorder %s33, 3
      %p149 = por %p147, %p148
      %p151 = scmp.ne.s32.totalorder %s134, %s150
      %p152 = scmp.eq.s32.totalorder %s33, 0
      %p153 = por %p151, %p152
      %p154 = scmp.le.s32.totalorder 1, %s27
      %p155 = scmp.lt.s32.totalorder %s27, 5
      %p156 = pnand %p154, %p155
      %p157 = pneg %p156
      // Predicated region
      $region9: #{yolo_loss.1} parent=5 // pred_check
        _
      $region10: #{yolo_loss.1} parent=5 // pred_check_branch
        %159 = sbr.rel (%p156) target = $region12
      $region11: #{yolo_loss.1} parent=5 // pred_region
        %s160 = ssub.s32 %s27, 1
        // Predicated region
        $region13: #{yolo_loss.1} parent=11 // pred_check
          %p161 = pneg %p60
        $region14: #{yolo_loss.1} parent=11 // pred_check_branch
          %163 = sbr.rel (%p161) target = $region16
        $region15: #{yolo_loss.1} parent=11 // pred_region
          %s165 = ssub.s32 16, 16
          %166 = vsyncadd [#allocation7], %s165
          %s168 = sshll.u32 %s3, 4
          %s169 = int_to_ptr.vmem [resolvable:$true] %s168
          %171 = dma.vmem_to_smem %s169, 16, [#allocation6], [#allocation7]
        $region16: #{yolo_loss.1} parent=11 // pred_fallthru
          _
      $region12: #{yolo_loss.1} parent=5 // pred_fallthru
        _
      %p172 = scmp.lt.s32.totalorder %s27, 4
      // Predicated region
      $region17: #{yolo_loss.1} parent=5 // pred_check
        %p173 = pneg %p172
      $region18: #{yolo_loss.1} parent=5 // pred_check_branch
        %175 = sbr.rel (%p173) target = $region20
      $region19: #{yolo_loss.1} parent=5 // pred_region
        // Predicated region
        $region21: #{yolo_loss.1} parent=19 // pred_check
          %p176 = pneg %p84
        $region22: #{yolo_loss.1} parent=19 // pred_check_branch
          %178 = sbr.rel (%p176) target = $region24
        $region23: #{yolo_loss.1} parent=19 // pred_region
          %s179 = sand.u32 %s74, 1
          %s180 = sand.u32 %s74, 1
          %s181 = smul.addr %s180, 320
          %s182 = scalar_lea.vmem [#allocation8], %s181
          %s183 = smul.u32 %s34, 2
          %s184 = sadd.s32 %s183, %s35
          %s185 = smul.u32 4, %s184
          %s186 = smul.addr %s185, 8
          %s187 = scalar_lea.vmem %s4, %s186
          // Predicated region
          $region25: #{yolo_loss.1} parent=23 // pred_check
            _
          $region26: #{yolo_loss.1} parent=23 // pred_check_branch
            %189 = sbr.rel (0) target = $region28
          $region27: #{yolo_loss.1} parent=23 // pred_region
            // Predicated region
            $region29: #{yolo_loss.1} parent=27 // pred_check
              _
            $region30: #{yolo_loss.1} parent=27 // pred_check_branch
              %191 = sbr.rel (0) target = $region32
            $region31: #{yolo_loss.1} parent=27 // pred_region
              // Predicated region
              $region44: #{yolo_loss.1} parent=31 // pred_check
                _
              $region45: #{yolo_loss.1} parent=31 // pred_check_branch
                %284 = sbr.rel (0) target = $region47
              $region46: #{yolo_loss.1} parent=31 // pred_region
                loop: start=0, step=1, limit=1
                $region48: #{yolo_loss.1} parent=46 // loop_pre_header
                  _
                $region49: #{yolo_loss.1} parent=46 // loop_header
                  %s286 = sphi 0, %s290
                  %p287 = scmp.ge.s32.totalorder %s286, 1
                  %s291 = sphi %s187, %s187
                  %s292 = sphi %s182, %s182
                $region50: #{yolo_loss.1} parent=46 // loop_header_branch
                  %289 = sbr.rel (%p287) target = $region54
                $region51: #{yolo_loss.1} parent=46 // loop_body
                  %v293 = vld [vmem:[%s291] sm:$0xff]
                  %294 = vst [vmem:[%s292] sm:$0xff] %v293
                  %v295 = vld [vmem:[%s291 + $0x8] sm:$0xff]
                  %296 = vst [vmem:[%s292 + $0x8] sm:$0xff] %v295
                  %v297 = vld [vmem:[%s291 + $0x10] sm:$0xff]
                  %298 = vst [vmem:[%s292 + $0x10] sm:$0xff] %v297
                  %v299 = vld [vmem:[%s291 + $0x18] sm:$0xff]
                  %300 = vst [vmem:[%s292 + $0x18] sm:$0xff] %v299
                  %v301 = vld [vmem:[%s291 + $0x80] sm:$0xff]
                  %302 = vst [vmem:[%s292 + $0x20] sm:$0xff] %v301
                  %v303 = vld [vmem:[%s291 + $0x88] sm:$0xff]
                  %304 = vst [vmem:[%s292 + $0x28] sm:$0xff] %v303
                  %v305 = vld [vmem:[%s291 + $0x90] sm:$0xff]
                  %306 = vst [vmem:[%s292 + $0x30] sm:$0xff] %v305
                  %v307 = vld [vmem:[%s291 + $0x98] sm:$0xff]
                  %308 = vst [vmem:[%s292 + $0x38] sm:$0xff] %v307
                  %v309 = vld [vmem:[%s291 + $0x100] sm:$0xff]
                  %310 = vst [vmem:[%s292 + $0x40] sm:$0xff] %v309
                  %v311 = vld [vmem:[%s291 + $0x108] sm:$0xff]
                  %312 = vst [vmem:[%s292 + $0x48] sm:$0xff] %v311
                  %v313 = vld [vmem:[%s291 + $0x110] sm:$0xff]
                  %314 = vst [vmem:[%s292 + $0x50] sm:$0xff] %v313
                  %v315 = vld [vmem:[%s291 + $0x118] sm:$0xff]
                  %316 = vst [vmem:[%s292 + $0x58] sm:$0xff] %v315
                  %v317 = vld [vmem:[%s291 + $0x180] sm:$0xff]
                  %318 = vst [vmem:[%s292 + $0x60] sm:$0xff] %v317
                  %v319 = vld [vmem:[%s291 + $0x188] sm:$0xff]
                  %320 = vst [vmem:[%s292 + $0x68] sm:$0xff] %v319
                  %v321 = vld [vmem:[%s291 + $0x190] sm:$0xff]
                  %322 = vst [vmem:[%s292 + $0x70] sm:$0xff] %v321
                  %v323 = vld [vmem:[%s291 + $0x198] sm:$0xff]
                  %324 = vst [vmem:[%s292 + $0x78] sm:$0xff] %v323
                  %v325 = vld [vmem:[%s291 + $0x200] sm:$0xff]
                  %326 = vst [vmem:[%s292 + $0x80] sm:$0xff] %v325
                  %v327 = vld [vmem:[%s291 + $0x208] sm:$0xff]
                  %328 = vst [vmem:[%s292 + $0x88] sm:$0xff] %v327
                  %v329 = vld [vmem:[%s291 + $0x210] sm:$0xff]
                  %330 = vst [vmem:[%s292 + $0x90] sm:$0xff] %v329
                  %v331 = vld [vmem:[%s291 + $0x218] sm:$0xff]
                  %332 = vst [vmem:[%s292 + $0x98] sm:$0xff] %v331
                  %v333 = vld [vmem:[%s291 + $0x280] sm:$0xff]
                  %334 = vst [vmem:[%s292 + $0xa0] sm:$0xff] %v333
                  %v335 = vld [vmem:[%s291 + $0x288] sm:$0xff]
                  %336 = vst [vmem:[%s292 + $0xa8] sm:$0xff] %v335
                  %v337 = vld [vmem:[%s291 + $0x290] sm:$0xff]
                  %338 = vst [vmem:[%s292 + $0xb0] sm:$0xff] %v337
                  %v339 = vld [vmem:[%s291 + $0x298] sm:$0xff]
                  %340 = vst [vmem:[%s292 + $0xb8] sm:$0xff] %v339
                  %v341 = vld [vmem:[%s291 + $0x300] sm:$0xff]
                  %342 = vst [vmem:[%s292 + $0xc0] sm:$0xff] %v341
                  %v343 = vld [vmem:[%s291 + $0x308] sm:$0xff]
                  %344 = vst [vmem:[%s292 + $0xc8] sm:$0xff] %v343
                  %v345 = vld [vmem:[%s291 + $0x310] sm:$0xff]
                  %346 = vst [vmem:[%s292 + $0xd0] sm:$0xff] %v345
                  %v347 = vld [vmem:[%s291 + $0x318] sm:$0xff]
                  %348 = vst [vmem:[%s292 + $0xd8] sm:$0xff] %v347
                  %v349 = vld [vmem:[%s291 + $0x380] sm:$0xff]
                  %350 = vst [vmem:[%s292 + $0xe0] sm:$0xff] %v349
                  %v351 = vld [vmem:[%s291 + $0x388] sm:$0xff]
                  %352 = vst [vmem:[%s292 + $0xe8] sm:$0xff] %v351
                  %v353 = vld [vmem:[%s291 + $0x390] sm:$0xff]
                  %354 = vst [vmem:[%s292 + $0xf0] sm:$0xff] %v353
                  %v355 = vld [vmem:[%s291 + $0x398] sm:$0xff]
                  %356 = vst [vmem:[%s292 + $0xf8] sm:$0xff] %v355
                  %v357 = vld [vmem:[%s291 + $0x400] sm:$0xff]
                  %358 = vst [vmem:[%s292 + $0x100] sm:$0xff] %v357
                  %v359 = vld [vmem:[%s291 + $0x408] sm:$0xff]
                  %360 = vst [vmem:[%s292 + $0x108] sm:$0xff] %v359
                  %v361 = vld [vmem:[%s291 + $0x410] sm:$0xff]
                  %362 = vst [vmem:[%s292 + $0x110] sm:$0xff] %v361
                  %v363 = vld [vmem:[%s291 + $0x418] sm:$0xff]
                  %364 = vst [vmem:[%s292 + $0x118] sm:$0xff] %v363
                  %v365 = vld [vmem:[%s291 + $0x480] sm:$0xff]
                  %366 = vst [vmem:[%s292 + $0x120] sm:$0xff] %v365
                  %v367 = vld [vmem:[%s291 + $0x488] sm:$0xff]
                  %368 = vst [vmem:[%s292 + $0x128] sm:$0xff] %v367
                  %v369 = vld [vmem:[%s291 + $0x490] sm:$0xff]
                  %370 = vst [vmem:[%s292 + $0x130] sm:$0xff] %v369
                  %v371 = vld [vmem:[%s291 + $0x498] sm:$0xff]
                  %372 = vst [vmem:[%s292 + $0x138] sm:$0xff] %v371
                $region52: #{yolo_loss.1} parent=46 // loop_footer
                  %s290 = sadd.s32 1, %s286
                $region53: #{yolo_loss.1} parent=46 // loop_footer_branch
                  %285 = sbr.rel target = $region49
                $region54: #{yolo_loss.1} parent=46 // loop_exit
                  _
              $region47: #{yolo_loss.1} parent=31 // pred_fallthru
                _
              // Predicated region
              $region55: #{yolo_loss.1} parent=31 // pred_check
                _
              $region56: #{yolo_loss.1} parent=31 // pred_check_branch
                %374 = sbr.rel target = $region58
              $region57: #{yolo_loss.1} parent=31 // pred_region
                _
              $region58: #{yolo_loss.1} parent=31 // pred_fallthru
                _
            $region32: #{yolo_loss.1} parent=27 // pred_fallthru
              _
            // Predicated region
            $region33: #{yolo_loss.1} parent=27 // pred_check
              _
            $region34: #{yolo_loss.1} parent=27 // pred_check_branch
              %193 = sbr.rel target = $region36
            $region35: #{yolo_loss.1} parent=27 // pred_region
              loop: start=0, step=1, limit=1
              $region37: #{yolo_loss.1} parent=35 // loop_pre_header
                _
              $region38: #{yolo_loss.1} parent=35 // loop_header
                %s196 = sphi 0, %s200
                %p197 = scmp.ge.s32.totalorder %s196, 1
                %s201 = sphi %s187, %s187
                %s202 = sphi %s182, %s182
              $region39: #{yolo_loss.1} parent=35 // loop_header_branch
                %199 = sbr.rel (%p197) target = $region43
              $region40: #{yolo_loss.1} parent=35 // loop_body
                %v203 = vld [vmem:[%s201] sm:$0xff]
                %204 = vst [vmem:[%s202] sm:$0xff] %v203
                %v205 = vld [vmem:[%s201 + $0x8] sm:$0xff]
                %206 = vst [vmem:[%s202 + $0x8] sm:$0xff] %v205
                %v207 = vld [vmem:[%s201 + $0x10] sm:$0xff]
                %208 = vst [vmem:[%s202 + $0x10] sm:$0xff] %v207
                %v209 = vld [vmem:[%s201 + $0x18] sm:$0xff]
                %210 = vst [vmem:[%s202 + $0x18] sm:$0xff] %v209
                %v211 = vld [vmem:[%s201 + $0x80] sm:$0xff]
                %212 = vst [vmem:[%s202 + $0x20] sm:$0xff] %v211
                %v213 = vld [vmem:[%s201 + $0x88] sm:$0xff]
                %214 = vst [vmem:[%s202 + $0x28] sm:$0xff] %v213
                %v215 = vld [vmem:[%s201 + $0x90] sm:$0xff]
                %216 = vst [vmem:[%s202 + $0x30] sm:$0xff] %v215
                %v217 = vld [vmem:[%s201 + $0x98] sm:$0xff]
                %218 = vst [vmem:[%s202 + $0x38] sm:$0xff] %v217
                %v219 = vld [vmem:[%s201 + $0x100] sm:$0xff]
                %220 = vst [vmem:[%s202 + $0x40] sm:$0xff] %v219
                %v221 = vld [vmem:[%s201 + $0x108] sm:$0xff]
                %222 = vst [vmem:[%s202 + $0x48] sm:$0xff] %v221
                %v223 = vld [vmem:[%s201 + $0x110] sm:$0xff]
                %224 = vst [vmem:[%s202 + $0x50] sm:$0xff] %v223
                %v225 = vld [vmem:[%s201 + $0x118] sm:$0xff]
                %226 = vst [vmem:[%s202 + $0x58] sm:$0xff] %v225
                %v227 = vld [vmem:[%s201 + $0x180] sm:$0xff]
                %228 = vst [vmem:[%s202 + $0x60] sm:$0xff] %v227
                %v229 = vld [vmem:[%s201 + $0x188] sm:$0xff]
                %230 = vst [vmem:[%s202 + $0x68] sm:$0xff] %v229
                %v231 = vld [vmem:[%s201 + $0x190] sm:$0xff]
                %232 = vst [vmem:[%s202 + $0x70] sm:$0xff] %v231
                %v233 = vld [vmem:[%s201 + $0x198] sm:$0xff]
                %234 = vst [vmem:[%s202 + $0x78] sm:$0xff] %v233
                %v235 = vld [vmem:[%s201 + $0x200] sm:$0xff]
                %236 = vst [vmem:[%s202 + $0x80] sm:$0xff] %v235
                %v237 = vld [vmem:[%s201 + $0x208] sm:$0xff]
                %238 = vst [vmem:[%s202 + $0x88] sm:$0xff] %v237
                %v239 = vld [vmem:[%s201 + $0x210] sm:$0xff]
                %240 = vst [vmem:[%s202 + $0x90] sm:$0xff] %v239
                %v241 = vld [vmem:[%s201 + $0x218] sm:$0xff]
                %242 = vst [vmem:[%s202 + $0x98] sm:$0xff] %v241
                %v243 = vld [vmem:[%s201 + $0x280] sm:$0xff]
                %244 = vst [vmem:[%s202 + $0xa0] sm:$0xff] %v243
                %v245 = vld [vmem:[%s201 + $0x288] sm:$0xff]
                %246 = vst [vmem:[%s202 + $0xa8] sm:$0xff] %v245
                %v247 = vld [vmem:[%s201 + $0x290] sm:$0xff]
                %248 = vst [vmem:[%s202 + $0xb0] sm:$0xff] %v247
                %v249 = vld [vmem:[%s201 + $0x298] sm:$0xff]
                %250 = vst [vmem:[%s202 + $0xb8] sm:$0xff] %v249
                %v251 = vld [vmem:[%s201 + $0x300] sm:$0xff]
                %252 = vst [vmem:[%s202 + $0xc0] sm:$0xff] %v251
                %v253 = vld [vmem:[%s201 + $0x308] sm:$0xff]
                %254 = vst [vmem:[%s202 + $0xc8] sm:$0xff] %v253
                %v255 = vld [vmem:[%s201 + $0x310] sm:$0xff]
                %256 = vst [vmem:[%s202 + $0xd0] sm:$0xff] %v255
                %v257 = vld [vmem:[%s201 + $0x318] sm:$0xff]
                %258 = vst [vmem:[%s202 + $0xd8] sm:$0xff] %v257
                %v259 = vld [vmem:[%s201 + $0x380] sm:$0xff]
                %260 = vst [vmem:[%s202 + $0xe0] sm:$0xff] %v259
                %v261 = vld [vmem:[%s201 + $0x388] sm:$0xff]
                %262 = vst [vmem:[%s202 + $0xe8] sm:$0xff] %v261
                %v263 = vld [vmem:[%s201 + $0x390] sm:$0xff]
                %264 = vst [vmem:[%s202 + $0xf0] sm:$0xff] %v263
                %v265 = vld [vmem:[%s201 + $0x398] sm:$0xff]
                %266 = vst [vmem:[%s202 + $0xf8] sm:$0xff] %v265
                %v267 = vld [vmem:[%s201 + $0x400] sm:$0xff]
                %268 = vst [vmem:[%s202 + $0x100] sm:$0xff] %v267
                %v269 = vld [vmem:[%s201 + $0x408] sm:$0xff]
                %270 = vst [vmem:[%s202 + $0x108] sm:$0xff] %v269
                %v271 = vld [vmem:[%s201 + $0x410] sm:$0xff]
                %272 = vst [vmem:[%s202 + $0x110] sm:$0xff] %v271
                %v273 = vld [vmem:[%s201 + $0x418] sm:$0xff]
                %274 = vst [vmem:[%s202 + $0x118] sm:$0xff] %v273
                %v275 = vld [vmem:[%s201 + $0x480] sm:$0xff]
                %276 = vst [vmem:[%s202 + $0x120] sm:$0xff] %v275
                %v277 = vld [vmem:[%s201 + $0x488] sm:$0xff]
                %278 = vst [vmem:[%s202 + $0x128] sm:$0xff] %v277
                %v279 = vld [vmem:[%s201 + $0x490] sm:$0xff]
                %280 = vst [vmem:[%s202 + $0x130] sm:$0xff] %v279
                %v281 = vld [vmem:[%s201 + $0x498] sm:$0xff]
                %282 = vst [vmem:[%s202 + $0x138] sm:$0xff] %v281
              $region41: #{yolo_loss.1} parent=35 // loop_footer
                %s200 = sadd.s32 1, %s196
              $region42: #{yolo_loss.1} parent=35 // loop_footer_branch
                %195 = sbr.rel target = $region38
              $region43: #{yolo_loss.1} parent=35 // loop_exit
                _
            $region36: #{yolo_loss.1} parent=27 // pred_fallthru
              _
          $region28: #{yolo_loss.1} parent=23 // pred_fallthru
            _
          %375 = vnop
        $region24: #{yolo_loss.1} parent=19 // pred_fallthru
          _
        // Predicated region
        $region59: #{yolo_loss.1} parent=19 // pred_check
          %p376 = pneg %p114
        $region60: #{yolo_loss.1} parent=19 // pred_check_branch
          %378 = sbr.rel (%p376) target = $region62
        $region61: #{yolo_loss.1} parent=19 // pred_region
          %s379 = sand.u32 %s104, 1
          %s380 = sand.u32 %s104, 1
          %s381 = smul.addr %s380, 192
          %s382 = scalar_lea.vmem [#allocation9], %s381
          %s383 = smul.u32 %s34, 2
          %s384 = sadd.s32 %s383, %s35
          %s385 = smul.u32 4, %s384
          %s386 = smul.addr %s385, 8
          %s387 = scalar_lea.vmem %s5, %s386
          // Predicated region
          $region63: #{yolo_loss.1} parent=61 // pred_check
            _
          $region64: #{yolo_loss.1} parent=61 // pred_check_branch
            %389 = sbr.rel (0) target = $region66
          $region65: #{yolo_loss.1} parent=61 // pred_region
            // Predicated region
            $region67: #{yolo_loss.1} parent=65 // pred_check
              _
            $region68: #{yolo_loss.1} parent=65 // pred_check_branch
              %391 = sbr.rel (0) target = $region70
            $region69: #{yolo_loss.1} parent=65 // pred_region
              // Predicated region
              $region82: #{yolo_loss.1} parent=69 // pred_check
                _
              $region83: #{yolo_loss.1} parent=69 // pred_check_branch
                %452 = sbr.rel (0) target = $region85
              $region84: #{yolo_loss.1} parent=69 // pred_region
                loop: start=0, step=1, limit=1
                $region86: #{yolo_loss.1} parent=84 // loop_pre_header
                  _
                $region87: #{yolo_loss.1} parent=84 // loop_header
                  %s454 = sphi 0, %s458
                  %p455 = scmp.ge.s32.totalorder %s454, 1
                  %s459 = sphi %s387, %s387
                  %s460 = sphi %s382, %s382
                $region88: #{yolo_loss.1} parent=84 // loop_header_branch
                  %457 = sbr.rel (%p455) target = $region92
                $region89: #{yolo_loss.1} parent=84 // loop_body
                  %v461 = vld [vmem:[%s459] sm:$0xff]
                  %462 = vst [vmem:[%s460] sm:$0xff] %v461
                  %v463 = vld [vmem:[%s459 + $0x8] sm:$0xff]
                  %464 = vst [vmem:[%s460 + $0x8] sm:$0xff] %v463
                  %v465 = vld [vmem:[%s459 + $0x10] sm:$0xff]
                  %466 = vst [vmem:[%s460 + $0x10] sm:$0xff] %v465
                  %v467 = vld [vmem:[%s459 + $0x18] sm:$0xff]
                  %468 = vst [vmem:[%s460 + $0x18] sm:$0xff] %v467
                  %v469 = vld [vmem:[%s459 + $0x80] sm:$0xff]
                  %470 = vst [vmem:[%s460 + $0x20] sm:$0xff] %v469
                  %v471 = vld [vmem:[%s459 + $0x88] sm:$0xff]
                  %472 = vst [vmem:[%s460 + $0x28] sm:$0xff] %v471
                  %v473 = vld [vmem:[%s459 + $0x90] sm:$0xff]
                  %474 = vst [vmem:[%s460 + $0x30] sm:$0xff] %v473
                  %v475 = vld [vmem:[%s459 + $0x98] sm:$0xff]
                  %476 = vst [vmem:[%s460 + $0x38] sm:$0xff] %v475
                  %v477 = vld [vmem:[%s459 + $0x100] sm:$0xff]
                  %478 = vst [vmem:[%s460 + $0x40] sm:$0xff] %v477
                  %v479 = vld [vmem:[%s459 + $0x108] sm:$0xff]
                  %480 = vst [vmem:[%s460 + $0x48] sm:$0xff] %v479
                  %v481 = vld [vmem:[%s459 + $0x110] sm:$0xff]
                  %482 = vst [vmem:[%s460 + $0x50] sm:$0xff] %v481
                  %v483 = vld [vmem:[%s459 + $0x118] sm:$0xff]
                  %484 = vst [vmem:[%s460 + $0x58] sm:$0xff] %v483
                  %v485 = vld [vmem:[%s459 + $0x180] sm:$0xff]
                  %486 = vst [vmem:[%s460 + $0x60] sm:$0xff] %v485
                  %v487 = vld [vmem:[%s459 + $0x188] sm:$0xff]
                  %488 = vst [vmem:[%s460 + $0x68] sm:$0xff] %v487
                  %v489 = vld [vmem:[%s459 + $0x190] sm:$0xff]
                  %490 = vst [vmem:[%s460 + $0x70] sm:$0xff] %v489
                  %v491 = vld [vmem:[%s459 + $0x198] sm:$0xff]
                  %492 = vst [vmem:[%s460 + $0x78] sm:$0xff] %v491
                  %v493 = vld [vmem:[%s459 + $0x200] sm:$0xff]
                  %494 = vst [vmem:[%s460 + $0x80] sm:$0xff] %v493
                  %v495 = vld [vmem:[%s459 + $0x208] sm:$0xff]
                  %496 = vst [vmem:[%s460 + $0x88] sm:$0xff] %v495
                  %v497 = vld [vmem:[%s459 + $0x210] sm:$0xff]
                  %498 = vst [vmem:[%s460 + $0x90] sm:$0xff] %v497
                  %v499 = vld [vmem:[%s459 + $0x218] sm:$0xff]
                  %500 = vst [vmem:[%s460 + $0x98] sm:$0xff] %v499
                  %v501 = vld [vmem:[%s459 + $0x280] sm:$0xff]
                  %502 = vst [vmem:[%s460 + $0xa0] sm:$0xff] %v501
                  %v503 = vld [vmem:[%s459 + $0x288] sm:$0xff]
                  %504 = vst [vmem:[%s460 + $0xa8] sm:$0xff] %v503
                  %v505 = vld [vmem:[%s459 + $0x290] sm:$0xff]
                  %506 = vst [vmem:[%s460 + $0xb0] sm:$0xff] %v505
                  %v507 = vld [vmem:[%s459 + $0x298] sm:$0xff]
                  %508 = vst [vmem:[%s460 + $0xb8] sm:$0xff] %v507
                $region90: #{yolo_loss.1} parent=84 // loop_footer
                  %s458 = sadd.s32 1, %s454
                $region91: #{yolo_loss.1} parent=84 // loop_footer_branch
                  %453 = sbr.rel target = $region87
                $region92: #{yolo_loss.1} parent=84 // loop_exit
                  _
              $region85: #{yolo_loss.1} parent=69 // pred_fallthru
                _
              // Predicated region
              $region93: #{yolo_loss.1} parent=69 // pred_check
                _
              $region94: #{yolo_loss.1} parent=69 // pred_check_branch
                %510 = sbr.rel target = $region96
              $region95: #{yolo_loss.1} parent=69 // pred_region
                _
              $region96: #{yolo_loss.1} parent=69 // pred_fallthru
                _
            $region70: #{yolo_loss.1} parent=65 // pred_fallthru
              _
            // Predicated region
            $region71: #{yolo_loss.1} parent=65 // pred_check
              _
            $region72: #{yolo_loss.1} parent=65 // pred_check_branch
              %393 = sbr.rel target = $region74
            $region73: #{yolo_loss.1} parent=65 // pred_region
              loop: start=0, step=1, limit=1
              $region75: #{yolo_loss.1} parent=73 // loop_pre_header
                _
              $region76: #{yolo_loss.1} parent=73 // loop_header
                %s396 = sphi 0, %s400
                %p397 = scmp.ge.s32.totalorder %s396, 1
                %s401 = sphi %s387, %s387
                %s402 = sphi %s382, %s382
              $region77: #{yolo_loss.1} parent=73 // loop_header_branch
                %399 = sbr.rel (%p397) target = $region81
              $region78: #{yolo_loss.1} parent=73 // loop_body
                %v403 = vld [vmem:[%s401] sm:$0xff]
                %404 = vst [vmem:[%s402] sm:$0xff] %v403
                %v405 = vld [vmem:[%s401 + $0x8] sm:$0xff]
                %406 = vst [vmem:[%s402 + $0x8] sm:$0xff] %v405
                %v407 = vld [vmem:[%s401 + $0x10] sm:$0xff]
                %408 = vst [vmem:[%s402 + $0x10] sm:$0xff] %v407
                %v409 = vld [vmem:[%s401 + $0x18] sm:$0xff]
                %410 = vst [vmem:[%s402 + $0x18] sm:$0xff] %v409
                %v411 = vld [vmem:[%s401 + $0x80] sm:$0xff]
                %412 = vst [vmem:[%s402 + $0x20] sm:$0xff] %v411
                %v413 = vld [vmem:[%s401 + $0x88] sm:$0xff]
                %414 = vst [vmem:[%s402 + $0x28] sm:$0xff] %v413
                %v415 = vld [vmem:[%s401 + $0x90] sm:$0xff]
                %416 = vst [vmem:[%s402 + $0x30] sm:$0xff] %v415
                %v417 = vld [vmem:[%s401 + $0x98] sm:$0xff]
                %418 = vst [vmem:[%s402 + $0x38] sm:$0xff] %v417
                %v419 = vld [vmem:[%s401 + $0x100] sm:$0xff]
                %420 = vst [vmem:[%s402 + $0x40] sm:$0xff] %v419
                %v421 = vld [vmem:[%s401 + $0x108] sm:$0xff]
                %422 = vst [vmem:[%s402 + $0x48] sm:$0xff] %v421
                %v423 = vld [vmem:[%s401 + $0x110] sm:$0xff]
                %424 = vst [vmem:[%s402 + $0x50] sm:$0xff] %v423
                %v425 = vld [vmem:[%s401 + $0x118] sm:$0xff]
                %426 = vst [vmem:[%s402 + $0x58] sm:$0xff] %v425
                %v427 = vld [vmem:[%s401 + $0x180] sm:$0xff]
                %428 = vst [vmem:[%s402 + $0x60] sm:$0xff] %v427
                %v429 = vld [vmem:[%s401 + $0x188] sm:$0xff]
                %430 = vst [vmem:[%s402 + $0x68] sm:$0xff] %v429
                %v431 = vld [vmem:[%s401 + $0x190] sm:$0xff]
                %432 = vst [vmem:[%s402 + $0x70] sm:$0xff] %v431
                %v433 = vld [vmem:[%s401 + $0x198] sm:$0xff]
                %434 = vst [vmem:[%s402 + $0x78] sm:$0xff] %v433
                %v435 = vld [vmem:[%s401 + $0x200] sm:$0xff]
                %436 = vst [vmem:[%s402 + $0x80] sm:$0xff] %v435
                %v437 = vld [vmem:[%s401 + $0x208] sm:$0xff]
                %438 = vst [vmem:[%s402 + $0x88] sm:$0xff] %v437
                %v439 = vld [vmem:[%s401 + $0x210] sm:$0xff]
                %440 = vst [vmem:[%s402 + $0x90] sm:$0xff] %v439
                %v441 = vld [vmem:[%s401 + $0x218] sm:$0xff]
                %442 = vst [vmem:[%s402 + $0x98] sm:$0xff] %v441
                %v443 = vld [vmem:[%s401 + $0x280] sm:$0xff]
                %444 = vst [vmem:[%s402 + $0xa0] sm:$0xff] %v443
                %v445 = vld [vmem:[%s401 + $0x288] sm:$0xff]
                %446 = vst [vmem:[%s402 + $0xa8] sm:$0xff] %v445
                %v447 = vld [vmem:[%s401 + $0x290] sm:$0xff]
                %448 = vst [vmem:[%s402 + $0xb0] sm:$0xff] %v447
                %v449 = vld [vmem:[%s401 + $0x298] sm:$0xff]
                %450 = vst [vmem:[%s402 + $0xb8] sm:$0xff] %v449
              $region79: #{yolo_loss.1} parent=73 // loop_footer
                %s400 = sadd.s32 1, %s396
              $region80: #{yolo_loss.1} parent=73 // loop_footer_branch
                %395 = sbr.rel target = $region76
              $region81: #{yolo_loss.1} parent=73 // loop_exit
                _
            $region74: #{yolo_loss.1} parent=65 // pred_fallthru
              _
          $region66: #{yolo_loss.1} parent=61 // pred_fallthru
            _
          %511 = vnop
        $region62: #{yolo_loss.1} parent=19 // pred_fallthru
          _
      $region20: #{yolo_loss.1} parent=5 // pred_fallthru
        _
      %p512 = scmp.le.s32.totalorder 1, %s27
      %p513 = scmp.lt.s32.totalorder %s27, 5
      %p514 = pnand %p512, %p513
      %p515 = pneg %p514
      // Predicated region
      $region97: #{yolo_loss.1} parent=5 // pred_check
        _
      $region98: #{yolo_loss.1} parent=5 // pred_check_branch
        %517 = sbr.rel (%p514) target = $region100
      $region99: #{yolo_loss.1} parent=5 // pred_region
        %s518 = ssub.s32 %s27, 1
        // Predicated region
        $region101: #{yolo_loss.1} parent=99 // pred_check
          %p519 = pneg %p60
        $region102: #{yolo_loss.1} parent=99 // pred_check_branch
          %521 = sbr.rel (%p519) target = $region104
        $region103: #{yolo_loss.1} parent=99 // pred_region
          %522 = dma.done [#allocation7], 16
        $region104: #{yolo_loss.1} parent=99 // pred_fallthru
          _
        %s523 = sand.u32 %s77, 1
        %s524 = sand.u32 %s77, 1
        %s525 = smul.addr %s524, 320
        %s526 = scalar_lea.vmem [#allocation8], %s525
        // Predicated region
        $region105: #{yolo_loss.1} parent=99 // pred_check
          %p527 = pneg %p90
        $region106: #{yolo_loss.1} parent=99 // pred_check_branch
          %529 = sbr.rel (%p527) target = $region108
        $region107: #{yolo_loss.1} parent=99 // pred_region
          _
        $region108: #{yolo_loss.1} parent=99 // pred_fallthru
          _
        %s530 = sand.u32 %s107, 1
        %s531 = sand.u32 %s107, 1
        %s532 = smul.addr %s531, 192
        %s533 = scalar_lea.vmem [#allocation9], %s532
        // Predicated region
        $region109: #{yolo_loss.1} parent=99 // pred_check
          %p534 = pneg %p120
        $region110: #{yolo_loss.1} parent=99 // pred_check_branch
          %536 = sbr.rel (%p534) target = $region112
        $region111: #{yolo_loss.1} parent=99 // pred_region
          _
        $region112: #{yolo_loss.1} parent=99 // pred_fallthru
          _
        %537 = sfence
        %p538 = pneg %p60
        %p539 = pneg %p57
        %s540 = sand.u32 %s77, 1
        %s541 = sand.u32 %s77, 1
        %s542 = smul.addr %s541, 320
        %s543 = scalar_lea.vmem [#allocation8], %s542
        %p544 = pneg %p90
        %p545 = pneg %p87
        %s546 = sand.u32 %s107, 1
        %s547 = sand.u32 %s107, 1
        %s548 = smul.addr %s547, 192
        %s549 = scalar_lea.vmem [#allocation9], %s548
        %p550 = pneg %p120
        %p551 = pneg %p117
        %p552 = pneg %p146
        %p553 = pneg %p143
        %p554 = scmp.lt.s32.totalorder %s36, 1
        %s555 = scalar_select %p554, %s36, 1
        %s556 = smul.addr %s555, 6
        %s557 = smul.addr %s556, 8
        %s558 = scalar_lea.vmem %s6, %s557
        %s559 = smul.u32 %s36, 2
        %s560 = sadd.s32 %s559, %s37
        %s561 = smul.u32 4, %s560
        %s562 = smul.u32 %s36, 2
        %s563 = sadd.s32 %s562, %s37
        %s564 = smul.u32 4, %s563
        %p565 = scmp.lt.s32.totalorder %s36, 1
        %s566 = scalar_select %p565, %s36, 1
        %s567 = smul.addr %s566, 6
        %s568 = smul.addr %s567, 8
        %s569 = scalar_lea.vmem %s6, %s568
        %s570 = smul.u32 %s36, 2
        %s571 = sadd.s32 %s570, %s37
        %p572 = scmp.eq.s32.totalorder %s37, 0
        // Predicated region
        $region113: #{yolo_loss.1} parent=99 // pred_check
          %p573 = pneg %p572
        $region114: #{yolo_loss.1} parent=99 // pred_check_branch
          %575 = sbr.rel (%p573) target = $region116
        $region115: #{yolo_loss.1} parent=99 // pred_region
          %576 = vst [vmem:[%s569] sm:$0xff] 0.0
          %577 = vst [vmem:[%s569 + $0x8] sm:$0xff] 0.0
          %578 = vst [vmem:[%s569 + $0x10] sm:$0xff] 0.0
          %579 = vst [vmem:[%s569 + $0x18] sm:$0xff] 0.0
          %580 = vst [vmem:[%s569 + $0x20] sm:$0xff] 0.0
          %581 = vst [vmem:[%s569 + $0x28] sm:$0xff] 0.0
        $region116: #{yolo_loss.1} parent=99 // pred_fallthru
          _
        %v582 = vld [vmem:[%s526] sm:$0xff]
        %v583 = vld [vmem:[%s526 + $0x8] sm:$0xff]
        %v584 = vld [vmem:[%s526 + $0x10] sm:$0xff]
        %v585 = vld [vmem:[%s526 + $0x18] sm:$0xff]
        %v586 = vld [vmem:[%s533] sm:$0xff]
        %v587 = vld [vmem:[%s533 + $0x8] sm:$0xff]
        %v588 = vld [vmem:[%s533 + $0x10] sm:$0xff]
        %v589 = vld [vmem:[%s533 + $0x18] sm:$0xff]
        %v590 = vlaneseq
        %v591 = vshrl.u32 %v590, 7
        %v592 = vadd.s32 %v591, 8
        %v593 = vadd.s32 %v591, 16
        %v594 = vadd.s32 %v591, 24
        %v595 = vmul.u32 %v591, 128
        %v596 = vmul.u32 %v592, 128
        %v597 = vmul.u32 %v593, 128
        %v598 = vmul.u32 %v594, 128
        %v599 = vlaneseq
        %v600 = vand.u32 %v599, 127
        %v601 = vadd.s32 %v595, %v600
        %v602 = vadd.s32 %v596, %v600
        %v603 = vadd.s32 %v597, %v600
        %v604 = vadd.s32 %v598, %v600
        %s605 = sld [smem:[#allocation3 + %s571]]
        %v606 = vstv %s605
        %vm607 = vcmp.lt.s32.totalorder %v601, %v606
        %vm608 = vcmp.lt.s32.totalorder %v602, %v606
        %vm609 = vcmp.lt.s32.totalorder %v603, %v606
        %vm610 = vcmp.lt.s32.totalorder %v604, %v606
        %vm611 = vcmp.eq.f32.partialorder %v586, 1.0
        %vm612 = vcmp.eq.f32.partialorder %v587, 1.0
        %vm613 = vcmp.eq.f32.partialorder %v588, 1.0
        %vm614 = vcmp.eq.f32.partialorder %v589, 1.0
        %vm615 = vmand %vm611, %vm607
        %vm616 = vmand %vm612, %vm608
        %vm617 = vmand %vm613, %vm609
        %vm618 = vmand %vm614, %vm610
        %v619 = vsel %vm615, 1.0, 0.0
        %v620 = vsel %vm616, 1.0, 0.0
        %v621 = vsel %vm617, 1.0, 0.0
        %v622 = vsel %vm618, 1.0, 0.0
        %vm623 = vcmp.eq.f32.partialorder %v586, 0.0
        %vm624 = vcmp.eq.f32.partialorder %v587, 0.0
        %vm625 = vcmp.eq.f32.partialorder %v588, 0.0
        %vm626 = vcmp.eq.f32.partialorder %v589, 0.0
        %vm627 = vmand %vm623, %vm607
        %vm628 = vmand %vm624, %vm608
        %vm629 = vmand %vm625, %vm609
        %vm630 = vmand %vm626, %vm610
        %v631 = vsel %vm627, 1.0, 0.0
        %v632 = vsel %vm628, 1.0, 0.0
        %v633 = vsel %vm629, 1.0, 0.0
        %v634 = vsel %vm630, 1.0, 0.0
        %v635 = vmax.f32 %v582, 0.0
        %v636 = vmax.f32 %v583, 0.0
        %v637 = vmax.f32 %v584, 0.0
        %v638 = vmax.f32 %v585, 0.0
        %v639 = vmul.f32 %v582, %v586
        %v640 = vmul.f32 %v583, %v587
        %v641 = vmul.f32 %v584, %v588
        %v642 = vmul.f32 %v585, %v589
        %v643 = vsub.f32 %v635, %v639
        %v644 = vsub.f32 %v636, %v640
        %v645 = vsub.f32 %v637, %v641
        %v646 = vsub.f32 %v638, %v642
        %v647 = vand.u32 2147483647, %v582
        %v648 = vand.u32 2147483647, %v583
        %v649 = vand.u32 2147483647, %v584
        %v650 = vand.u32 2147483647, %v585
        %v651 = vsub.f32 0.0, %v647
        %v652 = vsub.f32 0.0, %v648
        %v653 = vsub.f32 0.0, %v649
        %v654 = vsub.f32 0.0, %v650
        %v655 = vmul.f32 %v651, 1.442695
        %v656 = vpow.pop %v655
        %v657 = vmul.f32 %v652, 1.442695
        %v658 = vpow.pop %v657
        %v659 = vmul.f32 %v653, 1.442695
        %v660 = vpow.pop %v659
        %v661 = vmul.f32 %v654, 1.442695
        %v662 = vpow.pop %v661
        %v663 = vadd.f32 %v656, 1.0
        %v664 = vadd.f32 %v658, 1.0
        %v665 = vadd.f32 %v660, 1.0
        %v666 = vadd.f32 %v662, 1.0
        %v667 = vlog2.pop %v663
        %v668 = vmul.f32 %v667, 0.6931472
        %v669 = vlog2.pop %v664
        %v670 = vmul.f32 %v669, 0.6931472
        %v671 = vlog2.pop %v665
        %v672 = vmul.f32 %v671, 0.6931472
        %v673 = vlog2.pop %v666
        %v674 = vmul.f32 %v673, 0.6931472
        %v675 = vadd.f32 %v643, %v668
        %v676 = vadd.f32 %v644, %v670
        %v677 = vadd.f32 %v645, %v672
        %v678 = vadd.f32 %v646, %v674
        %v679 = vld [vmem:[%s569] sm:$0xff]
        %v680 = vmul.f32 %v675, %v631
        %v681 = vmul.f32 %v676, %v632
        %v682 = vmul.f32 %v677, %v633
        %v683 = vmul.f32 %v678, %v634
        %v684 = vadd.f32 %v680, %v681
        %v685 = vadd.f32 %v684, %v682
        %v686 = vadd.f32 %v685, %v683
        %v687 = vadd.f32 %v679, %v686
        %688 = vst [vmem:[%s569] sm:$0xff] %v687
        %s689 = scalar_lea.vmem %s569, 8
        %v690 = vld [vmem:[%s689] sm:$0xff]
        %v691 = vadd.f32 %v631, %v632
        %v692 = vadd.f32 %v691, %v633
        %v693 = vadd.f32 %v692, %v634
        %v694 = vadd.f32 %v690, %v693
        %695 = vst [vmem:[%s689] sm:$0xff] %v694
        %s696 = scalar_lea.vmem %s569, 24
        %v697 = vld [vmem:[%s696] sm:$0xff]
        %v698 = vadd.f32 %v619, %v620
        %v699 = vadd.f32 %v698, %v621
        %v700 = vadd.f32 %v699, %v622
        %v701 = vadd.f32 %v697, %v700
        %702 = vst [vmem:[%s696] sm:$0xff] %v701
        %s703 = sld [smem:[#allocation4 + %s571]]
        %p704 = scmp.gt.s32.totalorder %s703, 0
        // Predicated region
        $region117: #{yolo_loss.1} parent=99 // pred_check
          %p705 = pneg %p704
        $region118: #{yolo_loss.1} parent=99 // pred_check_branch
          %707 = sbr.rel (%p705) target = $region120
        $region119: #{yolo_loss.1} parent=99 // pred_region
          %s708 = sld [smem:[#allocation5 + %s571]]
          %s709 = smul.u32 %s708, 2
          %s710 = sld [smem:[#allocation6 + %s709]]
          %s711 = sadd.s32 %s709, 1
          %s712 = sld [smem:[#allocation6 + %s711]]
          %s713 = scalar_lea.vmem %s526, 32 [#allocation8]
          %v714 = vld [vmem:[%s713] sm:$0xff]
          %v715 = vld [vmem:[%s713 + $0x8] sm:$0xff]
          %v716 = vld [vmem:[%s713 + $0x10] sm:$0xff]
          %v717 = vld [vmem:[%s713 + $0x18] sm:$0xff]
          %s718 = scalar_lea.vmem %s526, 64 [#allocation8]
          %v719 = vld [vmem:[%s718] sm:$0xff]
          %v720 = vld [vmem:[%s718 + $0x8] sm:$0xff]
          %v721 = vld [vmem:[%s718 + $0x10] sm:$0xff]
          %v722 = vld [vmem:[%s718 + $0x18] sm:$0xff]
          %s723 = scalar_lea.vmem %s526, 96 [#allocation8]
          %v724 = vld [vmem:[%s723] sm:$0xff]
          %v725 = vld [vmem:[%s723 + $0x8] sm:$0xff]
          %v726 = vld [vmem:[%s723 + $0x10] sm:$0xff]
          %v727 = vld [vmem:[%s723 + $0x18] sm:$0xff]
          %s728 = scalar_lea.vmem %s526, 128 [#allocation8]
          %v729 = vld [vmem:[%s728] sm:$0xff]
          %v730 = vld [vmem:[%s728 + $0x8] sm:$0xff]
          %v731 = vld [vmem:[%s728 + $0x10] sm:$0xff]
          %v732 = vld [vmem:[%s728 + $0x18] sm:$0xff]
          %s733 = scalar_lea.vmem %s533, 32 [#allocation9]
          %v734 = vld [vmem:[%s733] sm:$0xff]
          %v735 = vld [vmem:[%s733 + $0x8] sm:$0xff]
          %v736 = vld [vmem:[%s733 + $0x10] sm:$0xff]
          %v737 = vld [vmem:[%s733 + $0x18] sm:$0xff]
          %s738 = scalar_lea.vmem %s533, 64 [#allocation9]
          %v739 = vld [vmem:[%s738] sm:$0xff]
          %v740 = vld [vmem:[%s738 + $0x8] sm:$0xff]
          %v741 = vld [vmem:[%s738 + $0x10] sm:$0xff]
          %v742 = vld [vmem:[%s738 + $0x18] sm:$0xff]
          %s743 = scalar_lea.vmem %s533, 96 [#allocation9]
          %v744 = vld [vmem:[%s743] sm:$0xff]
          %v745 = vld [vmem:[%s743 + $0x8] sm:$0xff]
          %v746 = vld [vmem:[%s743 + $0x10] sm:$0xff]
          %v747 = vld [vmem:[%s743 + $0x18] sm:$0xff]
          %s748 = scalar_lea.vmem %s533, 128 [#allocation9]
          %v749 = vld [vmem:[%s748] sm:$0xff]
          %v750 = vld [vmem:[%s748 + $0x8] sm:$0xff]
          %v751 = vld [vmem:[%s748 + $0x10] sm:$0xff]
          %v752 = vld [vmem:[%s748 + $0x18] sm:$0xff]
          %v753 = vsub.f32 0.0, %v714
          %v754 = vsub.f32 0.0, %v715
          %v755 = vsub.f32 0.0, %v716
          %v756 = vsub.f32 0.0, %v717
          %v757 = vmul.f32 %v753, 1.442695
          %v758 = vpow.pop %v757
          %v759 = vmul.f32 %v754, 1.442695
          %v760 = vpow.pop %v759
          %v761 = vmul.f32 %v755, 1.442695
          %v762 = vpow.pop %v761
          %v763 = vmul.f32 %v756, 1.442695
          %v764 = vpow.pop %v763
          %v765 = vadd.f32 %v758, 1.0
          %v766 = vadd.f32 %v760, 1.0
          %v767 = vadd.f32 %v762, 1.0
          %v768 = vadd.f32 %v764, 1.0
          %v769 = vrcp.pop %v765
          %v770 = vmul.f32 1.0, %v769
          %v771 = vrcp.pop %v766
          %v772 = vmul.f32 1.0, %v771
          %v773 = vrcp.pop %v767
          %v774 = vmul.f32 1.0, %v773
          %v775 = vrcp.pop %v768
          %v776 = vmul.f32 1.0, %v775
          %v777 = vsub.f32 0.0, %v719
          %v778 = vsub.f32 0.0, %v720
          %v779 = vsub.f32 0.0, %v721
          %v780 = vsub.f32 0.0, %v722
          %v781 = vmul.f32 %v777, 1.442695
          %v782 = vpow.pop %v781
          %v783 = vmul.f32 %v778, 1.442695
          %v784 = vpow.pop %v783
          %v785 = vmul.f32 %v779, 1.442695
          %v786 = vpow.pop %v785
          %v787 = vmul.f32 %v780, 1.442695
          %v788 = vpow.pop %v787
          %v789 = vadd.f32 %v782, 1.0
          %v790 = vadd.f32 %v784, 1.0
          %v791 = vadd.f32 %v786, 1.0
          %v792 = vadd.f32 %v788, 1.0
          %v793 = vrcp.pop %v789
          %v794 = vmul.f32 1.0, %v793
          %v795 = vrcp.pop %v790
          %v796 = vmul.f32 1.0, %v795
          %v797 = vrcp.pop %v791
          %v798 = vmul.f32 1.0, %v797
          %v799 = vrcp.pop %v792
          %v800 = vmul.f32 1.0, %v799
          %v801 = vstv %s710
          %v802 = vmul.f32 %v724, %v801
          %v803 = vmul.f32 %v725, %v801
          %v804 = vmul.f32 %v726, %v801
          %v805 = vmul.f32 %v727, %v801
          %v806 = vmul.f32 %v802, 1.442695
          %v807 = vpow.pop %v806
          %v808 = vmul.f32 %v803, 1.442695
          %v809 = vpow.pop %v808
          %v810 = vmul.f32 %v804, 1.442695
          %v811 = vpow.pop %v810
          %v812 = vmul.f32 %v805, 1.442695
          %v813 = vpow.pop %v812
          %v814 = vstv %s712
          %v815 = vmul.f32 %v729, %v814
          %v816 = vmul.f32 %v730, %v814
          %v817 = vmul.f32 %v731, %v814
          %v818 = vmul.f32 %v732, %v814
          %v819 = vmul.f32 %v815, 1.442695
          %v820 = vpow.pop %v819
          %v821 = vmul.f32 %v816, 1.442695
          %v822 = vpow.pop %v821
          %v823 = vmul.f32 %v817, 1.442695
          %v824 = vpow.pop %v823
          %v825 = vmul.f32 %v818, 1.442695
          %v826 = vpow.pop %v825
          %v827 = vmul.f32 %v807, 0.5
          %v828 = vmul.f32 %v809, 0.5
          %v829 = vmul.f32 %v811, 0.5
          %v830 = vmul.f32 %v813, 0.5
          %v831 = vsub.f32 %v770, %v827
          %v832 = vsub.f32 %v772, %v828
          %v833 = vsub.f32 %v774, %v829
          %v834 = vsub.f32 %v776, %v830
          %v835 = vadd.f32 %v770, %v827
          %v836 = vadd.f32 %v772, %v828
          %v837 = vadd.f32 %v774, %v829
          %v838 = vadd.f32 %v776, %v830
          %v839 = vmul.f32 %v820, 0.5
          %v840 = vmul.f32 %v822, 0.5
          %v841 = vmul.f32 %v824, 0.5
          %v842 = vmul.f32 %v826, 0.5
          %v843 = vsub.f32 %v794, %v839
          %v844 = vsub.f32 %v796, %v840
          %v845 = vsub.f32 %v798, %v841
          %v846 = vsub.f32 %v800, %v842
          %v847 = vadd.f32 %v794, %v839
          %v848 = vadd.f32 %v796, %v840
          %v849 = vadd.f32 %v798, %v841
          %v850 = vadd.f32 %v800, %v842
          %v851 = vmul.f32 %v744, 0.5
          %v852 = vmul.f32 %v745, 0.5
          %v853 = vmul.f32 %v746, 0.5
          %v854 = vmul.f32 %v747, 0.5
          %v855 = vsub.f32 %v734, %v851
          %v856 = vsub.f32 %v735, %v852
          %v857 = vsub.f32 %v736, %v853
          %v858 = vsub.f32 %v737, %v854
          %v859 = vadd.f32 %v734, %v851
          %v860 = vadd.f32 %v735, %v852
          %v861 = vadd.f32 %v736, %v853
          %v862 = vadd.f32 %v737, %v854
          %v863 = vmul.f32 %v749, 0.5
          %v864 = vmul.f32 %v750, 0.5
          %v865 = vmul.f32 %v751, 0.5
          %v866 = vmul.f32 %v752, 0.5
          %v867 = vsub.f32 %v739, %v863
          %v868 = vsub.f32 %v740, %v864
          %v869 = vsub.f32 %v741, %v865
          %v870 = vsub.f32 %v742, %v866
          %v871 = vadd.f32 %v739, %v863
          %v872 = vadd.f32 %v740, %v864
          %v873 = vadd.f32 %v741, %v865
          %v874 = vadd.f32 %v742, %v866
          %v875 = vmin.f32 %v835, %v859
          %v876 = vmin.f32 %v836, %v860
          %v877 = vmin.f32 %v837, %v861
          %v878 = vmin.f32 %v838, %v862
          %v879 = vmax.f32 %v831, %v855
          %v880 = vmax.f32 %v832, %v856
          %v881 = vmax.f32 %v833, %v857
          %v882 = vmax.f32 %v834, %v858
          %v883 = vsub.f32 %v875, %v879
          %v884 = vsub.f32 %v876, %v880
          %v885 = vsub.f32 %v877, %v881
          %v886 = vsub.f32 %v878, %v882
          %v887 = vmax.f32 %v883, 0.0
          %v888 = vmax.f32 %v884, 0.0
          %v889 = vmax.f32 %v885, 0.0
          %v890 = vmax.f32 %v886, 0.0
          %v891 = vmin.f32 %v847, %v871
          %v892 = vmin.f32 %v848, %v872
          %v893 = vmin.f32 %v849, %v873
          %v894 = vmin.f32 %v850, %v874
          %v895 = vmax.f32 %v843, %v867
          %v896 = vmax.f32 %v844, %v868
          %v897 = vmax.f32 %v845, %v869
          %v898 = vmax.f32 %v846, %v870
          %v899 = vsub.f32 %v891, %v895
          %v900 = vsub.f32 %v892, %v896
          %v901 = vsub.f32 %v893, %v897
          %v902 = vsub.f32 %v894, %v898
          %v903 = vmax.f32 %v899, 0.0
          %v904 = vmax.f32 %v900, 0.0
          %v905 = vmax.f32 %v901, 0.0
          %v906 = vmax.f32 %v902, 0.0
          %v907 = vmul.f32 %v887, %v903
          %v908 = vmul.f32 %v888, %v904
          %v909 = vmul.f32 %v889, %v905
          %v910 = vmul.f32 %v890, %v906
          %v911 = vsub.f32 %v835, %v831
          %v912 = vsub.f32 %v836, %v832
          %v913 = vsub.f32 %v837, %v833
          %v914 = vsub.f32 %v838, %v834
          %v915 = vsub.f32 %v847, %v843
          %v916 = vsub.f32 %v848, %v844
          %v917 = vsub.f32 %v849, %v845
          %v918 = vsub.f32 %v850, %v846
          %v919 = vmul.f32 %v911, %v915
          %v920 = vmul.f32 %v912, %v916
          %v921 = vmul.f32 %v913, %v917
          %v922 = vmul.f32 %v914, %v918
          %v923 = vand.u32 2147483647, %v919
          %v924 = vand.u32 2147483647, %v920
          %v925 = vand.u32 2147483647, %v921
          %v926 = vand.u32 2147483647, %v922
          %v927 = vsub.f32 %v859, %v855
          %v928 = vsub.f32 %v860, %v856
          %v929 = vsub.f32 %v861, %v857
          %v930 = vsub.f32 %v862, %v858
          %v931 = vsub.f32 %v871, %v867
          %v932 = vsub.f32 %v872, %v868
          %v933 = vsub.f32 %v873, %v869
          %v934 = vsub.f32 %v874, %v870
          %v935 = vmul.f32 %v927, %v931
          %v936 = vmul.f32 %v928, %v932
          %v937 = vmul.f32 %v929, %v933
          %v938 = vmul.f32 %v930, %v934
          %v939 = vand.u32 2147483647, %v935
          %v940 = vand.u32 2147483647, %v936
          %v941 = vand.u32 2147483647, %v937
          %v942 = vand.u32 2147483647, %v938
          %v943 = vadd.f32 %v923, %v939
          %v944 = vadd.f32 %v924, %v940
          %v945 = vadd.f32 %v925, %v941
          %v946 = vadd.f32 %v926, %v942
          %v947 = vsub.f32 %v943, %v907
          %v948 = vsub.f32 %v944, %v908
          %v949 = vsub.f32 %v945, %v909
          %v950 = vsub.f32 %v946, %v910
          %v951 = vadd.f32 %v947, 1e-06
          %v952 = vadd.f32 %v948, 1e-06
          %v953 = vadd.f32 %v949, 1e-06
          %v954 = vadd.f32 %v950, 1e-06
          %v955 = vrcp.pop %v951
          %v956 = vmul.f32 %v907, %v955
          %v957 = vrcp.pop %v952
          %v958 = vmul.f32 %v908, %v957
          %v959 = vrcp.pop %v953
          %v960 = vmul.f32 %v909, %v959
          %v961 = vrcp.pop %v954
          %v962 = vmul.f32 %v910, %v961
          %v963 = vsub.f32 0.0, %v582
          %v964 = vsub.f32 0.0, %v583
          %v965 = vsub.f32 0.0, %v584
          %v966 = vsub.f32 0.0, %v585
          %v967 = vmul.f32 %v963, 1.442695
          %v968 = vpow.pop %v967
          %v969 = vmul.f32 %v964, 1.442695
          %v970 = vpow.pop %v969
          %v971 = vmul.f32 %v965, 1.442695
          %v972 = vpow.pop %v971
          %v973 = vmul.f32 %v966, 1.442695
          %v974 = vpow.pop %v973
          %v975 = vadd.f32 %v968, 1.0
          %v976 = vadd.f32 %v970, 1.0
          %v977 = vadd.f32 %v972, 1.0
          %v978 = vadd.f32 %v974, 1.0
          %v979 = vrcp.pop %v975
          %v980 = vmul.f32 1.0, %v979
          %v981 = vrcp.pop %v976
          %v982 = vmul.f32 1.0, %v981
          %v983 = vrcp.pop %v977
          %v984 = vmul.f32 1.0, %v983
          %v985 = vrcp.pop %v978
          %v986 = vmul.f32 1.0, %v985
          %v987 = vmul.f32 %v956, %v586
          %v988 = vmul.f32 %v958, %v587
          %v989 = vmul.f32 %v960, %v588
          %v990 = vmul.f32 %v962, %v589
          %v991 = vsub.f32 %v980, %v987
          %v992 = vsub.f32 %v982, %v988
          %v993 = vsub.f32 %v984, %v989
          %v994 = vsub.f32 %v986, %v990
          %v995 = vmul.f32 %v991, %v991
          %v996 = vmul.f32 %v992, %v992
          %v997 = vmul.f32 %v993, %v993
          %v998 = vmul.f32 %v994, %v994
          %s999 = scalar_lea.vmem %s569, 16
          %v1000 = vld [vmem:[%s999] sm:$0xff]
          %v1001 = vmul.f32 %v995, %v619
          %v1002 = vmul.f32 %v996, %v620
          %v1003 = vmul.f32 %v997, %v621
          %v1004 = vmul.f32 %v998, %v622
          %v1005 = vadd.f32 %v1001, %v1002
          %v1006 = vadd.f32 %v1005, %v1003
          %v1007 = vadd.f32 %v1006, %v1004
          %v1008 = vadd.f32 %v1000, %v1007
          %1009 = vst [vmem:[%s999] sm:$0xff] %v1008
          %v1010 = vrcp.pop %v801
          %v1011 = vmul.f32 %v744, %v1010
          %v1012 = vmul.f32 %v745, %v1010
          %v1013 = vmul.f32 %v746, %v1010
          %v1014 = vmul.f32 %v747, %v1010
          %v1015 = vadd.f32 %v1011, 1e-16
          %v1016 = vadd.f32 %v1012, 1e-16
          %v1017 = vadd.f32 %v1013, 1e-16
          %v1018 = vadd.f32 %v1014, 1e-16
          %v1019 = vlog2.pop %v1015
          %v1020 = vmul.f32 %v1019, 0.6931472
          %v1021 = vlog2.pop %v1016
          %v1022 = vmul.f32 %v1021, 0.6931472
          %v1023 = vlog2.pop %v1017
          %v1024 = vmul.f32 %v1023, 0.6931472
          %v1025 = vlog2.pop %v1018
          %v1026 = vmul.f32 %v1025, 0.6931472
          %v1027 = vrcp.pop %v814
          %v1028 = vmul.f32 %v749, %v1027
          %v1029 = vmul.f32 %v750, %v1027
          %v1030 = vmul.f32 %v751, %v1027
          %v1031 = vmul.f32 %v752, %v1027
          %v1032 = vadd.f32 %v1028, 1e-16
          %v1033 = vadd.f32 %v1029, 1e-16
          %v1034 = vadd.f32 %v1030, 1e-16
          %v1035 = vadd.f32 %v1031, 1e-16
          %v1036 = vlog2.pop %v1032
          %v1037 = vmul.f32 %v1036, 0.6931472
          %v1038 = vlog2.pop %v1033
          %v1039 = vmul.f32 %v1038, 0.6931472
          %v1040 = vlog2.pop %v1034
          %v1041 = vmul.f32 %v1040, 0.6931472
          %v1042 = vlog2.pop %v1035
          %v1043 = vmul.f32 %v1042, 0.6931472
          %v1044 = vsub.f32 %v770, %v734
          %v1045 = vsub.f32 %v772, %v735
          %v1046 = vsub.f32 %v774, %v736
          %v1047 = vsub.f32 %v776, %v737
          %v1048 = vmul.f32 %v1044, %v1044
          %v1049 = vmul.f32 %v1045, %v1045
          %v1050 = vmul.f32 %v1046, %v1046
          %v1051 = vmul.f32 %v1047, %v1047
          %v1052 = vsub.f32 %v794, %v739
          %v1053 = vsub.f32 %v796, %v740
          %v1054 = vsub.f32 %v798, %v741
          %v1055 = vsub.f32 %v800, %v742
          %v1056 = vmul.f32 %v1052, %v1052
          %v1057 = vmul.f32 %v1053, %v1053
          %v1058 = vmul.f32 %v1054, %v1054
          %v1059 = vmul.f32 %v1055, %v1055
          %v1060 = vadd.f32 %v1048, %v1056
          %v1061 = vadd.f32 %v1049, %v1057
          %v1062 = vadd.f32 %v1050, %v1058
          %v1063 = vadd.f32 %v1051, %v1059
          %v1064 = vsub.f32 %v724, %v1020
          %v1065 = vsub.f32 %v725, %v1022
          %v1066 = vsub.f32 %v726, %v1024
          %v1067 = vsub.f32 %v727, %v1026
          %v1068 = vmul.f32 %v1064, %v1064
          %v1069 = vmul.f32 %v1065, %v1065
          %v1070 = vmul.f32 %v1066, %v1066
          %v1071 = vmul.f32 %v1067, %v1067
          %v1072 = vadd.f32 %v1060, %v1068
          %v1073 = vadd.f32 %v1061, %v1069
          %v1074 = vadd.f32 %v1062, %v1070
          %v1075 = vadd.f32 %v1063, %v1071
          %v1076 = vsub.f32 %v729, %v1037
          %v1077 = vsub.f32 %v730, %v1039
          %v1078 = vsub.f32 %v731, %v1041
          %v1079 = vsub.f32 %v732, %v1043
          %v1080 = vmul.f32 %v1076, %v1076
          %v1081 = vmul.f32 %v1077, %v1077
          %v1082 = vmul.f32 %v1078, %v1078
          %v1083 = vmul.f32 %v1079, %v1079
          %v1084 = vadd.f32 %v1072, %v1080
          %v1085 = vadd.f32 %v1073, %v1081
          %v1086 = vadd.f32 %v1074, %v1082
          %v1087 = vadd.f32 %v1075, %v1083
          %s1088 = scalar_lea.vmem %s569, 32
          %v1089 = vld [vmem:[%s1088] sm:$0xff]
          %v1090 = vmul.f32 %v1084, %v619
          %v1091 = vmul.f32 %v1085, %v620
          %v1092 = vmul.f32 %v1086, %v621
          %v1093 = vmul.f32 %v1087, %v622
          %v1094 = vadd.f32 %v1090, %v1091
          %v1095 = vadd.f32 %v1094, %v1092
          %v1096 = vadd.f32 %v1095, %v1093
          %v1097 = vadd.f32 %v1089, %v1096
          %1098 = vst [vmem:[%s1088] sm:$0xff] %v1097
          %s1099 = scalar_lea.vmem %s533, 160 [#allocation9]
          %v1100 = vld [vmem:[%s1099] sm:$0xff]
          %v1101 = vld [vmem:[%s1099 + $0x8] sm:$0xff]
          %v1102 = vld [vmem:[%s1099 + $0x10] sm:$0xff]
          %v1103 = vld [vmem:[%s1099 + $0x18] sm:$0xff]
          %v1104 = vcvt.f32.s32.to.zero.pseudo %v1100
          %v1105 = vcvt.f32.s32.to.zero.pseudo %v1101
          %v1106 = vcvt.f32.s32.to.zero.pseudo %v1102
          %v1107 = vcvt.f32.s32.to.zero.pseudo %v1103
          %s1108 = scalar_lea.vmem %s526, 160 [#allocation8]
          %v1109 = vld [vmem:[%s1108] sm:$0xff]
          %v1110 = vld [vmem:[%s1108 + $0x8] sm:$0xff]
          %v1111 = vld [vmem:[%s1108 + $0x10] sm:$0xff]
          %v1112 = vld [vmem:[%s1108 + $0x18] sm:$0xff]
          %s1113 = scalar_lea.vmem %s526, 192 [#allocation8]
          %v1114 = vld [vmem:[%s1113] sm:$0xff]
          %v1115 = vld [vmem:[%s1113 + $0x8] sm:$0xff]
          %v1116 = vld [vmem:[%s1113 + $0x10] sm:$0xff]
          %v1117 = vld [vmem:[%s1113 + $0x18] sm:$0xff]
          %v1118 = vmax.f32 %v1109, %v1114
          %v1119 = vmax.f32 %v1110, %v1115
          %v1120 = vmax.f32 %v1111, %v1116
          %v1121 = vmax.f32 %v1112, %v1117
          %s1122 = scalar_lea.vmem %s526, 224 [#allocation8]
          %v1123 = vld [vmem:[%s1122] sm:$0xff]
          %v1124 = vld [vmem:[%s1122 + $0x8] sm:$0xff]
          %v1125 = vld [vmem:[%s1122 + $0x10] sm:$0xff]
          %v1126 = vld [vmem:[%s1122 + $0x18] sm:$0xff]
          %v1127 = vmax.f32 %v1118, %v1123
          %v1128 = vmax.f32 %v1119, %v1124
          %v1129 = vmax.f32 %v1120, %v1125
          %v1130 = vmax.f32 %v1121, %v1126
          %s1131 = scalar_lea.vmem %s526, 256 [#allocation8]
          %v1132 = vld [vmem:[%s1131] sm:$0xff]
          %v1133 = vld [vmem:[%s1131 + $0x8] sm:$0xff]
          %v1134 = vld [vmem:[%s1131 + $0x10] sm:$0xff]
          %v1135 = vld [vmem:[%s1131 + $0x18] sm:$0xff]
          %v1136 = vmax.f32 %v1127, %v1132
          %v1137 = vmax.f32 %v1128, %v1133
          %v1138 = vmax.f32 %v1129, %v1134
          %v1139 = vmax.f32 %v1130, %v1135
          %s1140 = scalar_lea.vmem %s526, 288 [#allocation8]
          %v1141 = vld [vmem:[%s1140] sm:$0xff]
          %v1142 = vld [vmem:[%s1140 + $0x8] sm:$0xff]
          %v1143 = vld [vmem:[%s1140 + $0x10] sm:$0xff]
          %v1144 = vld [vmem:[%s1140 + $0x18] sm:$0xff]
          %v1145 = vmax.f32 %v1136, %v1141
          %v1146 = vmax.f32 %v1137, %v1142
          %v1147 = vmax.f32 %v1138, %v1143
          %v1148 = vmax.f32 %v1139, %v1144
          %v1149 = vsub.f32 %v1109, %v1145
          %v1150 = vsub.f32 %v1110, %v1146
          %v1151 = vsub.f32 %v1111, %v1147
          %v1152 = vsub.f32 %v1112, %v1148
          %v1153 = vmul.f32 %v1149, 1.442695
          %v1154 = vpow.pop %v1153
          %v1155 = vmul.f32 %v1150, 1.442695
          %v1156 = vpow.pop %v1155
          %v1157 = vmul.f32 %v1151, 1.442695
          %v1158 = vpow.pop %v1157
          %v1159 = vmul.f32 %v1152, 1.442695
          %v1160 = vpow.pop %v1159
          %v1161 = vadd.f32 %v1154, 0.0
          %v1162 = vadd.f32 %v1156, 0.0
          %v1163 = vadd.f32 %v1158, 0.0
          %v1164 = vadd.f32 %v1160, 0.0
          %vm1165 = vcmp.eq.s32.totalorder %v1104, 0
          %vm1166 = vcmp.eq.s32.totalorder %v1105, 0
          %vm1167 = vcmp.eq.s32.totalorder %v1106, 0
          %vm1168 = vcmp.eq.s32.totalorder %v1107, 0
          %v1169 = vsel %vm1165, %v1109, 0.0
          %v1170 = vsel %vm1166, %v1110, 0.0
          %v1171 = vsel %vm1167, %v1111, 0.0
          %v1172 = vsel %vm1168, %v1112, 0.0
          %v1173 = vadd.f32 %v1169, 0.0
          %v1174 = vadd.f32 %v1170, 0.0
          %v1175 = vadd.f32 %v1171, 0.0
          %v1176 = vadd.f32 %v1172, 0.0
          %v1177 = vsub.f32 %v1114, %v1145
          %v1178 = vsub.f32 %v1115, %v1146
          %v1179 = vsub.f32 %v1116, %v1147
          %v1180 = vsub.f32 %v1117, %v1148
          %v1181 = vmul.f32 %v1177, 1.442695
          %v1182 = vpow.pop %v1181
          %v1183 = vmul.f32 %v1178, 1.442695
          %v1184 = vpow.pop %v1183
          %v1185 = vmul.f32 %v1179, 1.442695
          %v1186 = vpow.pop %v1185
          %v1187 = vmul.f32 %v1180, 1.442695
          %v1188 = vpow.pop %v1187
          %v1189 = vadd.f32 %v1161, %v1182
          %v1190 = vadd.f32 %v1162, %v1184
          %v1191 = vadd.f32 %v1163, %v1186
          %v1192 = vadd.f32 %v1164, %v1188
          %vm1193 = vcmp.eq.s32.totalorder %v1104, 1
          %vm1194 = vcmp.eq.s32.totalorder %v1105, 1
          %vm1195 = vcmp.eq.s32.totalorder %v1106, 1
          %vm1196 = vcmp.eq.s32.totalorder %v1107, 1
          %v1197 = vsel %vm1193, %v1114, 0.0
          %v1198 = vsel %vm1194, %v1115, 0.0
          %v1199 = vsel %vm1195, %v1116, 0.0
          %v1200 = vsel %vm1196, %v1117, 0.0
          %v1201 = vadd.f32 %v1173, %v1197
          %v1202 = vadd.f32 %v1174, %v1198
          %v1203 = vadd.f32 %v1175, %v1199
          %v1204 = vadd.f32 %v1176, %v1200
          %v1205 = vsub.f32 %v1123, %v1145
          %v1206 = vsub.f32 %v1124, %v1146
          %v1207 = vsub.f32 %v1125, %v1147
          %v1208 = vsub.f32 %v1126, %v1148
          %v1209 = vmul.f32 %v1205, 1.442695
          %v1210 = vpow.pop %v1209
          %v1211 = vmul.f32 %v1206, 1.442695
          %v1212 = vpow.pop %v1211
          %v1213 = vmul.f32 %v1207, 1.442695
          %v1214 = vpow.pop %v1213
          %v1215 = vmul.f32 %v1208, 1.442695
          %v1216 = vpow.pop %v1215
          %v1217 = vadd.f32 %v1189, %v1210
          %v1218 = vadd.f32 %v1190, %v1212
          %v1219 = vadd.f32 %v1191, %v1214
          %v1220 = vadd.f32 %v1192, %v1216
          %vm1221 = vcmp.eq.s32.totalorder %v1104, 2
          %vm1222 = vcmp.eq.s32.totalorder %v1105, 2
          %vm1223 = vcmp.eq.s32.totalorder %v1106, 2
          %vm1224 = vcmp.eq.s32.totalorder %v1107, 2
          %v1225 = vsel %vm1221, %v1123, 0.0
          %v1226 = vsel %vm1222, %v1124, 0.0
          %v1227 = vsel %vm1223, %v1125, 0.0
          %v1228 = vsel %vm1224, %v1126, 0.0
          %v1229 = vadd.f32 %v1201, %v1225
          %v1230 = vadd.f32 %v1202, %v1226
          %v1231 = vadd.f32 %v1203, %v1227
          %v1232 = vadd.f32 %v1204, %v1228
          %v1233 = vsub.f32 %v1132, %v1145
          %v1234 = vsub.f32 %v1133, %v1146
          %v1235 = vsub.f32 %v1134, %v1147
          %v1236 = vsub.f32 %v1135, %v1148
          %v1237 = vmul.f32 %v1233, 1.442695
          %v1238 = vpow.pop %v1237
          %v1239 = vmul.f32 %v1234, 1.442695
          %v1240 = vpow.pop %v1239
          %v1241 = vmul.f32 %v1235, 1.442695
          %v1242 = vpow.pop %v1241
          %v1243 = vmul.f32 %v1236, 1.442695
          %v1244 = vpow.pop %v1243
          %v1245 = vadd.f32 %v1217, %v1238
          %v1246 = vadd.f32 %v1218, %v1240
          %v1247 = vadd.f32 %v1219, %v1242
          %v1248 = vadd.f32 %v1220, %v1244
          %vm1249 = vcmp.eq.s32.totalorder %v1104, 3
          %vm1250 = vcmp.eq.s32.totalorder %v1105, 3
          %vm1251 = vcmp.eq.s32.totalorder %v1106, 3
          %vm1252 = vcmp.eq.s32.totalorder %v1107, 3
          %v1253 = vsel %vm1249, %v1132, 0.0
          %v1254 = vsel %vm1250, %v1133, 0.0
          %v1255 = vsel %vm1251, %v1134, 0.0
          %v1256 = vsel %vm1252, %v1135, 0.0
          %v1257 = vadd.f32 %v1229, %v1253
          %v1258 = vadd.f32 %v1230, %v1254
          %v1259 = vadd.f32 %v1231, %v1255
          %v1260 = vadd.f32 %v1232, %v1256
          %v1261 = vsub.f32 %v1141, %v1145
          %v1262 = vsub.f32 %v1142, %v1146
          %v1263 = vsub.f32 %v1143, %v1147
          %v1264 = vsub.f32 %v1144, %v1148
          %v1265 = vmul.f32 %v1261, 1.442695
          %v1266 = vpow.pop %v1265
          %v1267 = vmul.f32 %v1262, 1.442695
          %v1268 = vpow.pop %v1267
          %v1269 = vmul.f32 %v1263, 1.442695
          %v1270 = vpow.pop %v1269
          %v1271 = vmul.f32 %v1264, 1.442695
          %v1272 = vpow.pop %v1271
          %v1273 = vadd.f32 %v1245, %v1266
          %v1274 = vadd.f32 %v1246, %v1268
          %v1275 = vadd.f32 %v1247, %v1270
          %v1276 = vadd.f32 %v1248, %v1272
          %vm1277 = vcmp.eq.s32.totalorder %v1104, 4
          %vm1278 = vcmp.eq.s32.totalorder %v1105, 4
          %vm1279 = vcmp.eq.s32.totalorder %v1106, 4
          %vm1280 = vcmp.eq.s32.totalorder %v1107, 4
          %v1281 = vsel %vm1277, %v1141, 0.0
          %v1282 = vsel %vm1278, %v1142, 0.0
          %v1283 = vsel %vm1279, %v1143, 0.0
          %v1284 = vsel %vm1280, %v1144, 0.0
          %v1285 = vadd.f32 %v1257, %v1281
          %v1286 = vadd.f32 %v1258, %v1282
          %v1287 = vadd.f32 %v1259, %v1283
          %v1288 = vadd.f32 %v1260, %v1284
          %v1289 = vlog2.pop %v1273
          %v1290 = vmul.f32 %v1289, 0.6931472
          %v1291 = vlog2.pop %v1274
          %v1292 = vmul.f32 %v1291, 0.6931472
          %v1293 = vlog2.pop %v1275
          %v1294 = vmul.f32 %v1293, 0.6931472
          %v1295 = vlog2.pop %v1276
          %v1296 = vmul.f32 %v1295, 0.6931472
          %v1297 = vadd.f32 %v1145, %v1290
          %v1298 = vadd.f32 %v1146, %v1292
          %v1299 = vadd.f32 %v1147, %v1294
          %v1300 = vadd.f32 %v1148, %v1296
          %v1301 = vsub.f32 %v1297, %v1285
          %v1302 = vsub.f32 %v1298, %v1286
          %v1303 = vsub.f32 %v1299, %v1287
          %v1304 = vsub.f32 %v1300, %v1288
          %s1305 = scalar_lea.vmem %s569, 40
          %v1306 = vld [vmem:[%s1305] sm:$0xff]
          %v1307 = vmul.f32 %v1301, %v619
          %v1308 = vmul.f32 %v1302, %v620
          %v1309 = vmul.f32 %v1303, %v621
          %v1310 = vmul.f32 %v1304, %v622
          %v1311 = vadd.f32 %v1307, %v1308
          %v1312 = vadd.f32 %v1311, %v1309
          %v1313 = vadd.f32 %v1312, %v1310
          %v1314 = vadd.f32 %v1306, %v1313
          %1315 = vst [vmem:[%s1305] sm:$0xff] %v1314
        $region120: #{yolo_loss.1} parent=99 // pred_fallthru
          _
        %p1316 = scmp.lt.s32.totalorder %s36, 1
        %s1317 = scalar_select %p1316, %s36, 1
        %s1318 = smul.addr %s1317, 6
        %s1319 = smul.addr %s1318, 8
        %s1320 = scalar_lea.vmem %s6, %s1319
        // Predicated region
        $region121: #{yolo_loss.1} parent=99 // pred_check
          %p1321 = pneg %p143
        $region122: #{yolo_loss.1} parent=99 // pred_check_branch
          %1323 = sbr.rel (%p1321) target = $region124
        $region123: #{yolo_loss.1} parent=99 // pred_region
          _
        $region124: #{yolo_loss.1} parent=99 // pred_fallthru
          _
      $region100: #{yolo_loss.1} parent=5 // pred_fallthru
        _
      %p1324 = scmp.le.s32.totalorder 2, %s27
      // Predicated region
      $region125: #{yolo_loss.1} parent=5 // pred_check
        %p1325 = pneg %p1324
      $region126: #{yolo_loss.1} parent=5 // pred_check_branch
        %1327 = sbr.rel (%p1325) target = $region128
      $region127: #{yolo_loss.1} parent=5 // pred_region
        %s1328 = ssub.s32 %s27, 2
        // Predicated region
        $region129: #{yolo_loss.1} parent=127 // pred_check
          %p1329 = pneg %p149
        $region130: #{yolo_loss.1} parent=127 // pred_check_branch
          %1331 = sbr.rel (%p1329) target = $region132
        $region131: #{yolo_loss.1} parent=127 // pred_region
          %p1332 = scmp.lt.s32.totalorder %s38, 1
          %s1333 = scalar_select %p1332, %s38, 1
          %s1334 = smul.addr %s1333, 6
          %s1335 = smul.addr %s1334, 8
          %s1336 = scalar_lea.vmem %s6, %s1335
        $region132: #{yolo_loss.1} parent=127 // pred_fallthru
          _
      $region128: #{yolo_loss.1} parent=5 // pred_fallthru
        _
    $region6: #{yolo_loss.1} parent=1 // loop_footer
      %s31 = sadd.s32 1, %s27
    $region7: #{yolo_loss.1} parent=1 // loop_footer_branch
      %26 = sbr.rel target = $region3
    $region8: #{yolo_loss.1} parent=1 // loop_exit
      _
    %1337 = vsyncpa [#allocation7], 1
    %s1338 = scalar_lea.sflag [#allocation7], 1
    %1339 = vsyncpa %s1338, 1

</llo_original>
